<compile_context>
chip_gen: v6e
topology: v6e:2x2x1
jax: 0.10.0
libtpu: 0.0.40
codegen_flags: <defaults>
</compile_context>

<pallas_src>
import functools
import itertools

import jax
import jax.numpy as jnp
from jax.experimental import pallas as pl
from jax.experimental.pallas import tpu as pltpu


def make_divisible(v, divisor=8, min_value=1):
    if min_value is None:
        min_value = divisor
    new_v = max(min_value, int(v + divisor / 2) // divisor * divisor)
    if new_v < 0.9 * v:
        new_v += divisor
    return new_v


def _round_up(v, m):
    return -(-v // m) * m


def _conv2d_tap_kernel(x_ref, w_ref, b_ref, o_ref, *, b_blk, kh, kw, wp, l_pad):
    """Per-tap MXU accumulation over a batch block.

    x_ref: (b_blk, cin, flat_pad)       bf16  zero-padded, flattened images
    w_ref: (kh*kw, cout_pad, cin)       bf16  per-tap weight slabs
    b_ref: (cout_pad, 1)                f32   bias (zero in padded rows)
    o_ref: (b_blk, cout_pad, l_pad)     f32   lane-dense flat output
    """
    cout_pad = o_ref.shape[1]
    bias = b_ref[...]                                    # (cout_pad, 1)
    taps = [w_ref[t] for t in range(kh * kw)]            # hoisted weight loads

    for b in range(b_blk):
        acc = jnp.zeros((cout_pad, l_pad), jnp.float32)
        for t, (r, c) in enumerate(itertools.product(range(kh), range(kw))):
            off = r * wp + c
            xs = x_ref[b, :, off:off + l_pad]            # (cin, l_pad) shifted view
            acc = acc + jnp.dot(taps[t], xs, preferred_element_type=jnp.float32)
        o_ref[b] = (acc + bias).astype(o_ref.dtype)


def sliceable_conv2d(x, weight, bias, *, stride=1, padding=0, dilation=1,
                     groups=1, curr_slice=1.0, fixed_out=False,
                     divisor=1, min_channels=1, batch_block=None):
    """Forward of SliceableConv2d.forward (groups=1, stride=1, dilation=1 path)."""
    # TODO(synk): stride>1 / dilation>1 / depthwise (groups==in_channels) paths not implemented.
    assert stride == 1 and dilation == 1 and groups == 1

    base_out, base_in, kh, kw = weight.shape
    if fixed_out:
        sliced_out = base_out
    else:
        sliced_out = make_divisible(round(curr_slice * base_out), divisor, min_channels)
    n, sliced_in, h, w = x.shape          # module takes in-channels from the input itself

    w_sl = weight[:sliced_out, :sliced_in, :, :]
    if bias is None:
        b_sl = jnp.zeros((sliced_out,), jnp.float32)
    else:
        b_sl = bias[:sliced_out].astype(jnp.float32)

    hp, wp = h + 2 * padding, w + 2 * padding
    ho, wo = hp - kh + 1, wp - kw + 1

    # Alignment padding: sublane-multiple cout, lane-multiple flat output,
    # flat image long enough for the last tap's shifted view.
    cout_pad = _round_up(sliced_out, 8)
    l_pad = _round_up(ho * wp, 128)
    flat_need = max(hp * wp, (kh - 1) * wp + (kw - 1) + l_pad)
    flat_pad = _round_up(flat_need, 128)

    # Batch blocking: amortize per-step cost while keeping >=2 parallel grid
    # steps when n >= 2 (v7x has two TensorCores).
    if batch_block is None:
        batch_block = max(1, min(8, -(-n // 2)))
    b_blk = batch_block
    n_pad = _round_up(n, b_blk)

    compute_dtype = jnp.bfloat16

    # One wrapper-side pad pass: batch + spatial zero padding, flatten, lane pad.
    xp = jnp.pad(x, ((0, n_pad - n), (0, 0), (padding, padding), (padding, padding)))
    xp = xp.reshape(n_pad, sliced_in, hp * wp)
    xp = jnp.pad(xp, ((0, 0), (0, 0), (0, flat_pad - hp * wp))).astype(compute_dtype)

    # Per-tap weight slabs (kh*kw, cout_pad, cin); padded rows are zero.
    w_taps = jnp.transpose(w_sl, (2, 3, 0, 1)).reshape(kh * kw, sliced_out, sliced_in)
    w_taps = jnp.pad(w_taps, ((0, 0), (0, cout_pad - sliced_out), (0, 0))).astype(compute_dtype)
    b2d = jnp.pad(b_sl, (0, cout_pad - sliced_out)).reshape(cout_pad, 1)

    kernel = functools.partial(
        _conv2d_tap_kernel, b_blk=b_blk, kh=kh, kw=kw, wp=wp, l_pad=l_pad)

    # Explicit VMEM budget: double-buffered in/out blocks + resident weights/bias.
    step_bytes = (2 * (b_blk * sliced_in * flat_pad * 2          # bf16 input block x2 bufs
                       + b_blk * cout_pad * l_pad * 4)           # f32 output block x2 bufs
                  + w_taps.size * 2 + cout_pad * 4)
    vmem_limit = int(min(64 * 2**20, max(32 * 2**20, 4 * step_bytes)))

    out_flat = pl.pallas_call(
        kernel,
        out_shape=jax.ShapeDtypeStruct((n_pad, cout_pad, l_pad), x.dtype),
        grid=(n_pad // b_blk,),
        in_specs=[
            pl.BlockSpec((b_blk, sliced_in, flat_pad), lambda i: (i, 0, 0)),
            pl.BlockSpec((kh * kw, cout_pad, sliced_in), lambda i: (0, 0, 0)),
            pl.BlockSpec((cout_pad, 1), lambda i: (0, 0)),
        ],
        out_specs=pl.BlockSpec((b_blk, cout_pad, l_pad), lambda i: (i, 0, 0)),
        compiler_params=pltpu.CompilerParams(
            dimension_semantics=("parallel",),
            vmem_limit_bytes=vmem_limit,
        ),
    )(xp, w_taps, b2d)

    # Drop padded batch rows / channels / lane tail and the kw-1 garbage
    # columns per output row; back to NCHW.
    out = out_flat[:n, :sliced_out, :ho * wp].reshape(n, sliced_out, ho, wp)[:, :, :, :wo]
    return out


if __name__ == "__main__":
    key = jax.random.PRNGKey(0)
    k_w, k_b, k_x = jax.random.split(key, 3)

    # Module config: SliceableConv2d(in_channels=4, out_channels=8, kernel_size=3,
    #                                padding=1, bias=True, divisor=1, min_channels=1)
    base_in, base_out, ksz = 4, 8, 3
    padding = 1
    curr_slice = 0.5  # set_width_mult(0.5)

    # Deterministic "base" parameters (full, unsliced - as created in __init__).
    weight = jax.random.normal(k_w, (base_out, base_in, ksz, ksz), jnp.float32) * 0.1
    bias = jax.random.normal(k_b, (base_out,), jnp.float32) * 0.1

    # Input already carries the sliced in_channels (the module reads input.shape[1]).
    sliced_in = make_divisible(round(curr_slice * base_in), 1, 1)   # -> 2
    x = jax.random.normal(k_x, (2, sliced_in, 16, 16), jnp.float32)

    out = sliceable_conv2d(x, weight, bias, stride=1, padding=padding,
                           curr_slice=curr_slice, divisor=1, min_channels=1)
    out = jax.block_until_ready(out)

    # Pure-JAX f32 reference of the same sliced conv.
    sliced_out = make_divisible(round(curr_slice * base_out), 1, 1)  # -> 4
    ref = jax.lax.conv_general_dilated(
        x, weight[:sliced_out, :sliced_in],
        window_strides=(1, 1), padding=((padding, padding), (padding, padding)),
        dimension_numbers=("NCHW", "OIHW", "NCHW"),
    ) + bias[:sliced_out][None, :, None, None]

    assert out.shape == (2, sliced_out, 16, 16)
    # bf16 MXU operands with f32 accumulation -> loosened tolerance vs f32 ref.
    assert jnp.allclose(out, ref, atol=3e-2, rtol=3e-2)
    print("KERNEL_OK")
</pallas_src>

<mosaic_0001>
module attributes {stable_mosaic.version = 11 : i64} {
  func.func @_conv2d_tap_kernel(%arg0: i32, %arg1: memref<1x2x512xbf16, #tpu.memory_space<vmem>>, %arg2: memref<9x8x2xbf16, #tpu.memory_space<vmem>>, %arg3: memref<8x1xf32, #tpu.memory_space<vmem>>, %arg4: memref<1x8x384xf32, #tpu.memory_space<vmem>>) attributes {dimension_semantics = [#tpu.dimension_semantics<parallel>], iteration_bounds = array<i64: 2>, scalar_prefetch = 0 : i64, scratch_operands = 0 : i64, tpu.core_type = #tpu.core_type<tc>, window_params = [{transform_indices = @transform_0, window_bounds = array<i64: 1, 2, 512>}, {pipeline_mode = #tpu.pipeline_mode<synchronous>, transform_indices = @transform_1, window_bounds = array<i64: 9, 8, 2>}, {pipeline_mode = #tpu.pipeline_mode<synchronous>, transform_indices = @transform_2, window_bounds = array<i64: 8, 1>}, {transform_indices = @transform_3, window_bounds = array<i64: 1, 8, 384>}]} {
    %c0 = arith.constant 0 : index
    %c0_0 = arith.constant 0 : index
    %0 = vector.load %arg3[%c0, %c0_0] : memref<8x1xf32, #tpu.memory_space<vmem>>, vector<8x1xf32>
    %c0_1 = arith.constant 0 : index
    %c0_2 = arith.constant 0 : index
    %c0_3 = arith.constant 0 : index
    %1 = vector.load %arg2[%c0_1, %c0_2, %c0_3] : memref<9x8x2xbf16, #tpu.memory_space<vmem>>, vector<1x8x2xbf16>
    %2 = vector.shape_cast %1 : vector<1x8x2xbf16> to vector<8x2xbf16>
    %c1 = arith.constant 1 : index
    %c0_4 = arith.constant 0 : index
    %c0_5 = arith.constant 0 : index
    %3 = vector.load %arg2[%c1, %c0_4, %c0_5] : memref<9x8x2xbf16, #tpu.memory_space<vmem>>, vector<1x8x2xbf16>
    %4 = vector.shape_cast %3 : vector<1x8x2xbf16> to vector<8x2xbf16>
    %c2 = arith.constant 2 : index
    %c0_6 = arith.constant 0 : index
    %c0_7 = arith.constant 0 : index
    %5 = vector.load %arg2[%c2, %c0_6, %c0_7] : memref<9x8x2xbf16, #tpu.memory_space<vmem>>, vector<1x8x2xbf16>
    %6 = vector.shape_cast %5 : vector<1x8x2xbf16> to vector<8x2xbf16>
    %c3 = arith.constant 3 : index
    %c0_8 = arith.constant 0 : index
    %c0_9 = arith.constant 0 : index
    %7 = vector.load %arg2[%c3, %c0_8, %c0_9] : memref<9x8x2xbf16, #tpu.memory_space<vmem>>, vector<1x8x2xbf16>
    %8 = vector.shape_cast %7 : vector<1x8x2xbf16> to vector<8x2xbf16>
    %c4 = arith.constant 4 : index
    %c0_10 = arith.constant 0 : index
    %c0_11 = arith.constant 0 : index
    %9 = vector.load %arg2[%c4, %c0_10, %c0_11] : memref<9x8x2xbf16, #tpu.memory_space<vmem>>, vector<1x8x2xbf16>
    %10 = vector.shape_cast %9 : vector<1x8x2xbf16> to vector<8x2xbf16>
    %c5 = arith.constant 5 : index
    %c0_12 = arith.constant 0 : index
    %c0_13 = arith.constant 0 : index
    %11 = vector.load %arg2[%c5, %c0_12, %c0_13] : memref<9x8x2xbf16, #tpu.memory_space<vmem>>, vector<1x8x2xbf16>
    %12 = vector.shape_cast %11 : vector<1x8x2xbf16> to vector<8x2xbf16>
    %c6 = arith.constant 6 : index
    %c0_14 = arith.constant 0 : index
    %c0_15 = arith.constant 0 : index
    %13 = vector.load %arg2[%c6, %c0_14, %c0_15] : memref<9x8x2xbf16, #tpu.memory_space<vmem>>, vector<1x8x2xbf16>
    %14 = vector.shape_cast %13 : vector<1x8x2xbf16> to vector<8x2xbf16>
    %c7 = arith.constant 7 : index
    %c0_16 = arith.constant 0 : index
    %c0_17 = arith.constant 0 : index
    %15 = vector.load %arg2[%c7, %c0_16, %c0_17] : memref<9x8x2xbf16, #tpu.memory_space<vmem>>, vector<1x8x2xbf16>
    %16 = vector.shape_cast %15 : vector<1x8x2xbf16> to vector<8x2xbf16>
    %c8 = arith.constant 8 : index
    %c0_18 = arith.constant 0 : index
    %c0_19 = arith.constant 0 : index
    %17 = vector.load %arg2[%c8, %c0_18, %c0_19] : memref<9x8x2xbf16, #tpu.memory_space<vmem>>, vector<1x8x2xbf16>
    %18 = vector.shape_cast %17 : vector<1x8x2xbf16> to vector<8x2xbf16>
    %cst = arith.constant 0.000000e+00 : f32
    %19 = vector.broadcast %cst : f32 to vector<8x384xf32>
    %c0_20 = arith.constant 0 : index
    %c0_21 = arith.constant 0 : index
    %c0_22 = arith.constant 0 : index
    %20 = vector.load %arg1[%c0_20, %c0_21, %c0_22] : memref<1x2x512xbf16, #tpu.memory_space<vmem>>, vector<1x2x384xbf16>
    %21 = vector.shape_cast %20 : vector<1x2x384xbf16> to vector<2x384xbf16>
    %cst_23 = arith.constant dense<0.000000e+00> : vector<8x384xf32>
    %22 = tpu.matmul %2, %21, %cst_23 {dimension_numbers = #tpu.dot_dimension_numbers<[1], [0], [0], [1], [0, 0, 1, 1], [], []>} : vector<8x2xbf16>, vector<2x384xbf16>, vector<8x384xf32> -> vector<8x384xf32>
    %23 = arith.addf %19, %22 : vector<8x384xf32>
    %c0_24 = arith.constant 0 : index
    %c0_25 = arith.constant 0 : index
    %c1_26 = arith.constant 1 : index
    %24 = vector.load %arg1[%c0_24, %c0_25, %c1_26] : memref<1x2x512xbf16, #tpu.memory_space<vmem>>, vector<1x2x384xbf16>
    %25 = vector.shape_cast %24 : vector<1x2x384xbf16> to vector<2x384xbf16>
    %cst_27 = arith.constant dense<0.000000e+00> : vector<8x384xf32>
    %26 = tpu.matmul %4, %25, %cst_27 {dimension_numbers = #tpu.dot_dimension_numbers<[1], [0], [0], [1], [0, 0, 1, 1], [], []>} : vector<8x2xbf16>, vector<2x384xbf16>, vector<8x384xf32> -> vector<8x384xf32>
    %27 = arith.addf %23, %26 : vector<8x384xf32>
    %c0_28 = arith.constant 0 : index
    %c0_29 = arith.constant 0 : index
    %c2_30 = arith.constant 2 : index
    %28 = vector.load %arg1[%c0_28, %c0_29, %c2_30] : memref<1x2x512xbf16, #tpu.memory_space<vmem>>, vector<1x2x384xbf16>
    %29 = vector.shape_cast %28 : vector<1x2x384xbf16> to vector<2x384xbf16>
    %cst_31 = arith.constant dense<0.000000e+00> : vector<8x384xf32>
    %30 = tpu.matmul %6, %29, %cst_31 {dimension_numbers = #tpu.dot_dimension_numbers<[1], [0], [0], [1], [0, 0, 1, 1], [], []>} : vector<8x2xbf16>, vector<2x384xbf16>, vector<8x384xf32> -> vector<8x384xf32>
    %31 = arith.addf %27, %30 : vector<8x384xf32>
    %c0_32 = arith.constant 0 : index
    %c0_33 = arith.constant 0 : index
    %c18 = arith.constant 18 : index
    %32 = vector.load %arg1[%c0_32, %c0_33, %c18] : memref<1x2x512xbf16, #tpu.memory_space<vmem>>, vector<1x2x384xbf16>
    %33 = vector.shape_cast %32 : vector<1x2x384xbf16> to vector<2x384xbf16>
    %cst_34 = arith.constant dense<0.000000e+00> : vector<8x384xf32>
    %34 = tpu.matmul %8, %33, %cst_34 {dimension_numbers = #tpu.dot_dimension_numbers<[1], [0], [0], [1], [0, 0, 1, 1], [], []>} : vector<8x2xbf16>, vector<2x384xbf16>, vector<8x384xf32> -> vector<8x384xf32>
    %35 = arith.addf %31, %34 : vector<8x384xf32>
    %c0_35 = arith.constant 0 : index
    %c0_36 = arith.constant 0 : index
    %c19 = arith.constant 19 : index
    %36 = vector.load %arg1[%c0_35, %c0_36, %c19] : memref<1x2x512xbf16, #tpu.memory_space<vmem>>, vector<1x2x384xbf16>
    %37 = vector.shape_cast %36 : vector<1x2x384xbf16> to vector<2x384xbf16>
    %cst_37 = arith.constant dense<0.000000e+00> : vector<8x384xf32>
    %38 = tpu.matmul %10, %37, %cst_37 {dimension_numbers = #tpu.dot_dimension_numbers<[1], [0], [0], [1], [0, 0, 1, 1], [], []>} : vector<8x2xbf16>, vector<2x384xbf16>, vector<8x384xf32> -> vector<8x384xf32>
    %39 = arith.addf %35, %38 : vector<8x384xf32>
    %c0_38 = arith.constant 0 : index
    %c0_39 = arith.constant 0 : index
    %c20 = arith.constant 20 : index
    %40 = vector.load %arg1[%c0_38, %c0_39, %c20] : memref<1x2x512xbf16, #tpu.memory_space<vmem>>, vector<1x2x384xbf16>
    %41 = vector.shape_cast %40 : vector<1x2x384xbf16> to vector<2x384xbf16>
    %cst_40 = arith.constant dense<0.000000e+00> : vector<8x384xf32>
    %42 = tpu.matmul %12, %41, %cst_40 {dimension_numbers = #tpu.dot_dimension_numbers<[1], [0], [0], [1], [0, 0, 1, 1], [], []>} : vector<8x2xbf16>, vector<2x384xbf16>, vector<8x384xf32> -> vector<8x384xf32>
    %43 = arith.addf %39, %42 : vector<8x384xf32>
    %c0_41 = arith.constant 0 : index
    %c0_42 = arith.constant 0 : index
    %c36 = arith.constant 36 : index
    %44 = vector.load %arg1[%c0_41, %c0_42, %c36] : memref<1x2x512xbf16, #tpu.memory_space<vmem>>, vector<1x2x384xbf16>
    %45 = vector.shape_cast %44 : vector<1x2x384xbf16> to vector<2x384xbf16>
    %cst_43 = arith.constant dense<0.000000e+00> : vector<8x384xf32>
    %46 = tpu.matmul %14, %45, %cst_43 {dimension_numbers = #tpu.dot_dimension_numbers<[1], [0], [0], [1], [0, 0, 1, 1], [], []>} : vector<8x2xbf16>, vector<2x384xbf16>, vector<8x384xf32> -> vector<8x384xf32>
    %47 = arith.addf %43, %46 : vector<8x384xf32>
    %c0_44 = arith.constant 0 : index
    %c0_45 = arith.constant 0 : index
    %c37 = arith.constant 37 : index
    %48 = vector.load %arg1[%c0_44, %c0_45, %c37] : memref<1x2x512xbf16, #tpu.memory_space<vmem>>, vector<1x2x384xbf16>
    %49 = vector.shape_cast %48 : vector<1x2x384xbf16> to vector<2x384xbf16>
    %cst_46 = arith.constant dense<0.000000e+00> : vector<8x384xf32>
    %50 = tpu.matmul %16, %49, %cst_46 {dimension_numbers = #tpu.dot_dimension_numbers<[1], [0], [0], [1], [0, 0, 1, 1], [], []>} : vector<8x2xbf16>, vector<2x384xbf16>, vector<8x384xf32> -> vector<8x384xf32>
    %51 = arith.addf %47, %50 : vector<8x384xf32>
    %c0_47 = arith.constant 0 : index
    %c0_48 = arith.constant 0 : index
    %c38 = arith.constant 38 : index
    %52 = vector.load %arg1[%c0_47, %c0_48, %c38] : memref<1x2x512xbf16, #tpu.memory_space<vmem>>, vector<1x2x384xbf16>
    %53 = vector.shape_cast %52 : vector<1x2x384xbf16> to vector<2x384xbf16>
    %cst_49 = arith.constant dense<0.000000e+00> : vector<8x384xf32>
    %54 = tpu.matmul %18, %53, %cst_49 {dimension_numbers = #tpu.dot_dimension_numbers<[1], [0], [0], [1], [0, 0, 1, 1], [], []>} : vector<8x2xbf16>, vector<2x384xbf16>, vector<8x384xf32> -> vector<8x384xf32>
    %55 = arith.addf %51, %54 : vector<8x384xf32>
    %56 = vector.broadcast %0 : vector<8x1xf32> to vector<8x384xf32>
    %57 = arith.addf %55, %56 : vector<8x384xf32>
    %c0_50 = arith.constant 0 : index
    %c0_51 = arith.constant 0 : index
    %c0_52 = arith.constant 0 : index
    %58 = vector.load %arg4[%c0_50, %c0_51, %c0_52] : memref<1x8x384xf32, #tpu.memory_space<vmem>>, vector<1x8x384xf32>
    %59 = vector.shape_cast %58 : vector<1x8x384xf32> to vector<8x384xf32>
    %60 = vector.shape_cast %57 : vector<8x384xf32> to vector<1x8x384xf32>
    tpu.vector_store %arg4[%c0_50, %c0_51, %c0_52], %60 {strides = array<i32>} : memref<1x8x384xf32, #tpu.memory_space<vmem>>, vector<1x8x384xf32>,
    return
  }
  func.func @transform_0(%arg0: i32) -> (i32, i32, i32) {
    %c0_i32 = arith.constant 0 : i32
    %c0_i32_0 = arith.constant 0 : i32
    %c0_i32_1 = arith.constant 0 : i32
    return %arg0, %c0_i32, %c0_i32_0 : i32, i32, i32
  }
  func.func @transform_1(%arg0: i32) -> (i32, i32, i32) {
    %c0_i32 = arith.constant 0 : i32
    %c0_i32_0 = arith.constant 0 : i32
    %c0_i32_1 = arith.constant 0 : i32
    %c0_i32_2 = arith.constant 0 : i32
    return %c0_i32, %c0_i32_0, %c0_i32_1 : i32, i32, i32
  }
  func.func @transform_2(%arg0: i32) -> (i32, i32) {
    %c0_i32 = arith.constant 0 : i32
    %c0_i32_0 = arith.constant 0 : i32
    %c0_i32_1 = arith.constant 0 : i32
    return %c0_i32, %c0_i32_0 : i32, i32
  }
  func.func @transform_3(%arg0: i32) -> (i32, i32, i32) {
    %c0_i32 = arith.constant 0 : i32
    %c0_i32_0 = arith.constant 0 : i32
    %c0_i32_1 = arith.constant 0 : i32
    return %arg0, %c0_i32, %c0_i32_0 : i32, i32, i32
  }
}

</mosaic_0001>

<llo_original>
// kernel: tpu_custom_call.1
$region0: #{tpu_custom_call.1}
  #allocation0 [shape = 'u32[]', space=smem, size = 0x4, offset = 0x4, fixed_abs, tag = 'smem constant byte address 0x4 - core index']
  #allocation1 [shape = 'u32[144,128]{1,0:T(1,128)}', space=vmem, size = 0x12000, scoped, tag = 'internal scratch']
  %s0 = inlined_call_operand.vmem [shape: bf16[2,2,512], index: 0, kind: input, shape index: {}]
  %s1 = inlined_call_operand.vmem [shape: bf16[9,8,2], index: 1, kind: input, shape index: {}]
  %s2 = inlined_call_operand.vmem [shape: f32[8,1], index: 2, kind: input, shape index: {}]
  %s3 = inlined_call_operand.hbm [shape: f32[2,8,384], index: 3, kind: output, shape index: {}]
  %s4 = sld [smem:[#allocation0]]
  $region45: #{tpu_custom_call.1} parent=0
    _
  %s6 = ssub.s32 1, %s4
  %s7 = scalar_select 0, %s6, %s4
  $region1: #{tpu_custom_call.1} parent=0
    #allocation2 [shape = 'u8[24576]{0}', space=vmem, size = 0x6000, scoped, tag = 'output window, operand 0']
    #allocation3 [shape = 's32[2]{0}', space=sflag, size = 0x8, scoped, tag = 'scoped memory for tpu_custom_call.1']
    %8 = vsyncpa [#allocation3], 0
    %s9 = scalar_lea.sflag [#allocation3], 1
    %10 = vsyncpa %s9, 0
    loop: start=0, step=1, limit=4
    $region2: #{tpu_custom_call.1} parent=1 // loop_pre_header
      _
    $region3: #{tpu_custom_call.1} parent=1 // loop_header
      %s12 = sphi 0, %s16
      %p13 = scmp.ge.s32.totalorder %s12, 4
      %s22 = sphi 0, %s24
      %s25 = sphi 0, %s22
      %s26 = sphi 0, %s25
      %s42 = sphi 0, %s26
      %s46 = sphi 0, %s46
      %s48 = sphi 0, %s46
      %s49 = sphi 0, %s48
      %s63 = sphi 0, %s49
      %s67 = sphi 0, %s67
      %s69 = sphi 0, %s67
      %s70 = sphi 0, %s69
      %s84 = sphi 0, %s70
      %s90 = sphi 0, %s92
      %s93 = sphi 0, %s90
      %s94 = sphi 0, %s93
      %s110 = sphi 0, %s94
    $region4: #{tpu_custom_call.1} parent=1 // loop_header_branch
      %15 = sbr.rel (%p13) target = $region8
    $region5: #{tpu_custom_call.1} parent=1 // loop_body
      %s17 = ssub.s32 %s12, 1
      %s18 = ssub.s32 %s12, 2
      %s19 = sadd.s32 %s12, 1
      %s20 = ssub.s32 %s12, %s19
      %p21 = scmp.eq.s32.totalorder %s20, 0
      %s23 = sadd.s32 %s22, 1
      %s24 = scalar_select %p21, %s22, %s23
      %p27 = pneg %p21
      %p28 = scmp.eq.s32.totalorder %s12, 1
      %p29 = por %p27, %p28
      %p30 = scmp.ne.s32.totalorder %s22, %s25
      %p31 = scmp.eq.s32.totalorder %s12, 0
      %p32 = por %p30, %p31
      %p33 = scmp.ne.s32.totalorder %s22, %s25
      %p34 = scmp.eq.s32.totalorder %s17, 1
      %p35 = por %p33, %p34
      %p36 = scmp.ne.s32.totalorder %s25, %s26
      %p37 = scmp.eq.s32.totalorder %s17, 0
      %p38 = por %p36, %p37
      %p39 = scmp.ne.s32.totalorder %s25, %s26
      %p40 = scmp.eq.s32.totalorder %s18, 1
      %p41 = por %p39, %p40
      %p43 = scmp.ne.s32.totalorder %s26, %s42
      %p44 = scmp.eq.s32.totalorder %s18, 0
      %p45 = por %p43, %p44
      %s47 = sadd.s32 %s46, 1
      %p50 = scmp.eq.s32.totalorder %s12, 1
      %p51 = scmp.ne.s32.totalorder %s46, %s48
      %p52 = scmp.eq.s32.totalorder %s12, 0
      %p53 = por %p51, %p52
      %p54 = scmp.ne.s32.totalorder %s46, %s48
      %p55 = scmp.eq.s32.totalorder %s17, 1
      %p56 = por %p54, %p55
      %p57 = scmp.ne.s32.totalorder %s48, %s49
      %p58 = scmp.eq.s32.totalorder %s17, 0
      %p59 = por %p57, %p58
      %p60 = scmp.ne.s32.totalorder %s48, %s49
      %p61 = scmp.eq.s32.totalorder %s18, 1
      %p62 = por %p60, %p61
      %p64 = scmp.ne.s32.totalorder %s49, %s63
      %p65 = scmp.eq.s32.totalorder %s18, 0
      %p66 = por %p64, %p65
      %s68 = sadd.s32 %s67, 1
      %p71 = scmp.eq.s32.totalorder %s12, 1
      %p72 = scmp.ne.s32.totalorder %s67, %s69
      %p73 = scmp.eq.s32.totalorder %s12, 0
      %p74 = por %p72, %p73
      %p75 = scmp.ne.s32.totalorder %s67, %s69
      %p76 = scmp.eq.s32.totalorder %s17, 1
      %p77 = por %p75, %p76
      %p78 = scmp.ne.s32.totalorder %s69, %s70
      %p79 = scmp.eq.s32.totalorder %s17, 0
      %p80 = por %p78, %p79
      %p81 = scmp.ne.s32.totalorder %s69, %s70
      %p82 = scmp.eq.s32.totalorder %s18, 1
      %p83 = por %p81, %p82
      %p85 = scmp.ne.s32.totalorder %s70, %s84
      %p86 = scmp.eq.s32.totalorder %s18, 0
      %p87 = por %p85, %p86
      %s88 = ssub.s32 %s12, %s19
      %p89 = scmp.eq.s32.totalorder %s88, 0
      %s91 = sadd.s32 %s90, 1
      %s92 = scalar_select %p89, %s90, %s91
      %p95 = pneg %p89
      %p96 = scmp.eq.s32.totalorder %s12, 1
      %p97 = por %p95, %p96
      %p98 = scmp.ne.s32.totalorder %s90, %s93
      %p99 = scmp.eq.s32.totalorder %s12, 0
      %p100 = por %p98, %p99
      %p101 = scmp.ne.s32.totalorder %s90, %s93
      %p102 = scmp.eq.s32.totalorder %s17, 1
      %p103 = por %p101, %p102
      %p104 = scmp.ne.s32.totalorder %s93, %s94
      %p105 = scmp.eq.s32.totalorder %s17, 0
      %p106 = por %p104, %p105
      %p107 = scmp.ne.s32.totalorder %s93, %s94
      %p108 = scmp.eq.s32.totalorder %s18, 1
      %p109 = por %p107, %p108
      %p111 = scmp.ne.s32.totalorder %s94, %s110
      %p112 = scmp.eq.s32.totalorder %s18, 0
      %p113 = por %p111, %p112
      %p114 = scmp.le.s32.totalorder 1, %s12
      %p115 = scmp.lt.s32.totalorder %s12, 3
      %p116 = pnand %p114, %p115
      %p117 = pneg %p116
      // Predicated region
      $region9: #{tpu_custom_call.1} parent=5 // pred_check
        _
      $region10: #{tpu_custom_call.1} parent=5 // pred_check_branch
        %119 = sbr.rel (%p116) target = $region12
      $region11: #{tpu_custom_call.1} parent=5 // pred_region
        %s120 = ssub.s32 %s12, 1
        // Predicated region
        $region13: #{tpu_custom_call.1} parent=11 // pred_check
          %p121 = pneg %p59
        $region14: #{tpu_custom_call.1} parent=11 // pred_check_branch
          %123 = sbr.rel (%p121) target = $region16
        $region15: #{tpu_custom_call.1} parent=11 // pred_region
          _
        $region16: #{tpu_custom_call.1} parent=11 // pred_fallthru
          _
        // Predicated region
        $region17: #{tpu_custom_call.1} parent=11 // pred_check
          %p124 = pneg %p80
        $region18: #{tpu_custom_call.1} parent=11 // pred_check_branch
          %126 = sbr.rel (%p124) target = $region20
        $region19: #{tpu_custom_call.1} parent=11 // pred_region
          _
        $region20: #{tpu_custom_call.1} parent=11 // pred_fallthru
          _
      $region12: #{tpu_custom_call.1} parent=5 // pred_fallthru
        _
      %p127 = scmp.lt.s32.totalorder %s12, 2
      // Predicated region
      $region21: #{tpu_custom_call.1} parent=5 // pred_check
        %p128 = pneg %p127
      $region22: #{tpu_custom_call.1} parent=5 // pred_check_branch
        %130 = sbr.rel (%p128) target = $region24
      $region23: #{tpu_custom_call.1} parent=5 // pred_region
        // Predicated region
        $region25: #{tpu_custom_call.1} parent=23 // pred_check
          %p131 = pneg %p32
        $region26: #{tpu_custom_call.1} parent=23 // pred_check_branch
          %133 = sbr.rel (%p131) target = $region28
        $region27: #{tpu_custom_call.1} parent=23 // pred_region
          %p134 = scmp.lt.s32.totalorder %s12, 1
          %s135 = scalar_select %p134, %s12, 1
          %s136 = smul.addr %s135, 4
          %s137 = scalar_lea.vmem %s0, %s136
        $region28: #{tpu_custom_call.1} parent=23 // pred_fallthru
          _
      $region24: #{tpu_custom_call.1} parent=5 // pred_fallthru
        _
      %p138 = scmp.le.s32.totalorder 1, %s12
      %p139 = scmp.lt.s32.totalorder %s12, 3
      %p140 = pnand %p138, %p139
      %p141 = pneg %p140
      // Predicated region
      $region29: #{tpu_custom_call.1} parent=5 // pred_check
        _
      $region30: #{tpu_custom_call.1} parent=5 // pred_check_branch
        %143 = sbr.rel (%p140) target = $region32
      $region31: #{tpu_custom_call.1} parent=5 // pred_region
        %s144 = ssub.s32 %s12, 1
        %p145 = scmp.lt.s32.totalorder %s17, 1
        %s146 = scalar_select %p145, %s17, 1
        %s147 = smul.addr %s146, 4
        %s148 = scalar_lea.vmem %s0, %s147
        %p149 = pneg %p38
        %p150 = pneg %p35
        %p151 = pneg %p59
        %p152 = pneg %p56
        %p153 = pneg %p80
        %p154 = pneg %p77
        %p155 = pneg %p106
        %p156 = pneg %p103
        %s157 = sand.u32 %s93, 1
        %s158 = scalar_lea.sflag [#allocation3], %s157
        %s159 = sand.u32 %s93, 1
        %s160 = smul.addr %s159, 24
        %s161 = scalar_lea.vmem [#allocation2], %s160
        %p162 = scmp.lt.s32.totalorder %s17, 1
        %s163 = scalar_select %p162, %s17, 1
        %s164 = smul.addr %s163, 4
        %s165 = scalar_lea.vmem %s0, %s164
        %v167 = vld [vmem:[%s2] sm:$0xff]
        %v168 = vld [vmem:[%s1] sm:$0xf]
        %s169 = scalar_lea.vmem %s1, 4
        %v170 = vld [vmem:[%s169] sm:$0xf]
        %s171 = scalar_lea.vmem %s1, 8
        %v172 = vld [vmem:[%s171] sm:$0xf]
        %s173 = scalar_lea.vmem %s1, 12
        %v174 = vld [vmem:[%s173] sm:$0xf]
        %s175 = scalar_lea.vmem %s1, 16
        %v176 = vld [vmem:[%s175] sm:$0xf]
        %s177 = scalar_lea.vmem %s1, 20
        %v178 = vld [vmem:[%s177] sm:$0xf]
        %s179 = scalar_lea.vmem %s1, 24
        %v180 = vld [vmem:[%s179] sm:$0xf]
        %s181 = scalar_lea.vmem %s1, 28
        %v182 = vld [vmem:[%s181] sm:$0xf]
        %s183 = scalar_lea.vmem %s1, 32
        %v184 = vld [vmem:[%s183] sm:$0xf]
        %v185 = vld [vmem:[%s165] sm:$0x7]
        %v186 = vld [vmem:[%s165] sm:$0xf]
        %v189 = vunpack.c.l.s4 1966171168
        %v190 = vunpack.c.0.s8 %v189
        %v191 = vlaneseq
        %v192 = vshrl.u32 %v191, 7
        %v193 = vsub.s32 %v190, %v192
        %v194 = vrot.slane %v186, %v193
        %v195 = vcombine.high %v194, %v194
        %v197 = vunpack.c.l.s4 1966171168
        %v198 = vunpack.c.0.s8 %v197
        %v199 = vlaneseq
        %v200 = vshrl.u32 %v199, 7
        %v201 = vsub.s32 %v198, %v200
        %v202 = vrot.slane %v194, %v201
        %v204 = vunpack.c.l.s4 1966171168
        %v205 = vunpack.c.0.s8 %v204
        %v206 = vlaneseq
        %v207 = vshrl.u32 %v206, 7
        %v208 = vsub.s32 %v205, %v207
        %v209 = vrot.slane %v195, %v208
        %v210 = vcombine.high %v202, %v202
        %v211 = vcombine.high %v209, %v209
        %212 = vrot.lane.b32.xlu0 %v202, 127
        %v213 = vpop.permute.xlu0 %212
        %214 = vrot.lane.b32.xlu0 %v209, 127
        %v215 = vpop.permute.xlu0 %214
        %216 = vrot.lane.b32.xlu0 %v210, 127
        %v217 = vpop.permute.xlu0 %216
        %218 = vrot.lane.b32.xlu0 %v211, 127
        %v219 = vpop.permute.xlu0 %218
        %vm220 = vcmask 1039360
        %v221 = vsel %vm220, %v213, %v215
        %v222 = vsel %vm220, %v215, %v217
        %v223 = vsel %vm220, %v217, %v219
        %vm224 = vcmask 15360
        %v226 = vsel %vm224, %v170, 0
        %vm228 = vcmask 1040384
        %v230 = vsel %vm228, %v221, 0
        %v233 = vsel %vm228, %v222, 0
        %v236 = vsel %vm228, %v223, 0
        %238 = vmatprep.subr.bf16.mxu0 0
        %239 = vmatpush1.bf16.msra.mxu0 0
        %240 = vmatprep.subr.bf16.mxu0 0
        %241 = vmatpush1.bf16.msra.mxu0 0
        %242 = vmatprep.subr.bf16.mxu0 0
        %243 = vmatpush1.bf16.msra.mxu0 0
        %244 = vmatprep.subr.bf16.mxu0 0
        %245 = vmatpush1.bf16.msra.mxu0 0
        %246 = vmatprep.subr.bf16.mxu0 0
        %247 = vmatpush1.bf16.msra.mxu0 0
        %248 = vmatprep.subr.bf16.mxu0 0
        %249 = vmatpush1.bf16.msra.mxu0 0
        %250 = vmatprep.subr.bf16.mxu0 0
        %251 = vmatpush1.bf16.msra.mxu0 0
        %252 = vmatprep.subr.bf16.mxu0 %v233
        %253 = vmatpush1.bf16.msra.mxu0 %v230
        %254 = vmatprep.subr.bf16.mxu0 0
        %255 = vmatpush2.bf16.msra.mxu0 0
        %256 = vmatprep.subr.bf16.mxu0 0
        %257 = vmatpush2.bf16.msra.mxu0 0
        %258 = vmatprep.subr.bf16.mxu0 0
        %259 = vmatpush2.bf16.msra.mxu0 0
        %260 = vmatprep.subr.bf16.mxu0 0
        %261 = vmatpush2.bf16.msra.mxu0 0
        %262 = vmatprep.subr.bf16.mxu0 0
        %263 = vmatpush2.bf16.msra.mxu0 0
        %264 = vmatprep.subr.bf16.mxu0 0
        %265 = vmatpush2.bf16.msra.mxu0 0
        %266 = vmatprep.subr.bf16.mxu0 0
        %267 = vmatpush2.bf16.msra.mxu0 0
        %268 = vmatprep.subr.bf16.mxu0 0
        %269 = vmatpush2.bf16.msra.mxu0 0
        %270 = vmatprep.mubr.bf16.mxu0 0
        %271 = vmatmul.mubr.bf16.gmra.mxu0 %v226
        %v272 = vpop.f32.mrf.mxu0
        %v273 = vadd.f32 0.0, %v272
        %v274 = vpop.f32.mrf.mxu0
        %v275 = vadd.f32 0.0, %v274
        %v276 = vpop.f32.mrf.mxu0
        %v277 = vpop.f32.mrf.mxu0
        %278 = vdwg.mxu0
        %279 = vmatprep.subr.bf16.mxu0 0
        %280 = vmatpush1.bf16.msra.mxu0 0
        %281 = vmatprep.subr.bf16.mxu0 0
        %282 = vmatpush1.bf16.msra.mxu0 0
        %283 = vmatprep.subr.bf16.mxu0 0
        %284 = vmatpush1.bf16.msra.mxu0 0
        %285 = vmatprep.subr.bf16.mxu0 0
        %286 = vmatpush1.bf16.msra.mxu0 0
        %287 = vmatprep.subr.bf16.mxu0 0
        %288 = vmatpush1.bf16.msra.mxu0 0
        %289 = vmatprep.subr.bf16.mxu0 0
        %290 = vmatpush1.bf16.msra.mxu0 0
        %291 = vmatprep.subr.bf16.mxu0 0
        %292 = vmatpush1.bf16.msra.mxu0 0
        %293 = vmatprep.subr.bf16.mxu0 0
        %294 = vmatpush1.bf16.msra.mxu0 %v236
        %295 = vmatprep.subr.bf16.mxu0 0
        %296 = vmatpush2.bf16.msra.mxu0 0
        %297 = vmatprep.subr.bf16.mxu0 0
        %298 = vmatpush2.bf16.msra.mxu0 0
        %299 = vmatprep.subr.bf16.mxu0 0
        %300 = vmatpush2.bf16.msra.mxu0 0
        %301 = vmatprep.subr.bf16.mxu0 0
        %302 = vmatpush2.bf16.msra.mxu0 0
        %303 = vmatprep.subr.bf16.mxu0 0
        %304 = vmatpush2.bf16.msra.mxu0 0
        %305 = vmatprep.subr.bf16.mxu0 0
        %306 = vmatpush2.bf16.msra.mxu0 0
        %307 = vmatprep.subr.bf16.mxu0 0
        %308 = vmatpush2.bf16.msra.mxu0 0
        %309 = vmatprep.subr.bf16.mxu0 0
        %310 = vmatpush2.bf16.msra.mxu0 0
        %311 = vmatprep.mubr.bf16.mxu0 0
        %312 = vmatmul.mubr.bf16.gmra.mxu0 %v226
        %v313 = vpop.f32.mrf.mxu0
        %v314 = vadd.f32 0.0, %v313
        %v315 = vpop.f32.mrf.mxu0
        %v316 = vpop.f32.mrf.mxu0
        %v317 = vpop.f32.mrf.mxu0
        %318 = vdwg.mxu0
        %v321 = vunpack.c.l.s4 1966171168
        %v322 = vunpack.c.0.s8 %v321
        %v323 = vlaneseq
        %v324 = vshrl.u32 %v323, 7
        %v325 = vsub.s32 %v322, %v324
        %v326 = vrot.slane %v185, %v325
        %v327 = vcombine.high %v326, %v326
        %v329 = vunpack.c.l.s4 1966171168
        %v330 = vunpack.c.0.s8 %v329
        %v331 = vlaneseq
        %v332 = vshrl.u32 %v331, 7
        %v333 = vsub.s32 %v330, %v332
        %v334 = vrot.slane %v326, %v333
        %v336 = vunpack.c.l.s4 1966171168
        %v337 = vunpack.c.0.s8 %v336
        %v338 = vlaneseq
        %v339 = vshrl.u32 %v338, 7
        %v340 = vsub.s32 %v337, %v339
        %v341 = vrot.slane %v327, %v340
        %v342 = vcombine.high %v334, %v334
        %v344 = vsel %vm224, %v168, 0
        %v347 = vsel %vm228, %v334, 0
        %v350 = vsel %vm228, %v341, 0
        %v353 = vsel %vm228, %v342, 0
        %355 = vmatprep.subr.bf16.mxu0 0
        %356 = vmatpush1.bf16.msra.mxu0 0
        %357 = vmatprep.subr.bf16.mxu0 0
        %358 = vmatpush1.bf16.msra.mxu0 0
        %359 = vmatprep.subr.bf16.mxu0 0
        %360 = vmatpush1.bf16.msra.mxu0 0
        %361 = vmatprep.subr.bf16.mxu0 0
        %362 = vmatpush1.bf16.msra.mxu0 0
        %363 = vmatprep.subr.bf16.mxu0 0
        %364 = vmatpush1.bf16.msra.mxu0 0
        %365 = vmatprep.subr.bf16.mxu0 0
        %366 = vmatpush1.bf16.msra.mxu0 0
        %367 = vmatprep.subr.bf16.mxu0 0
        %368 = vmatpush1.bf16.msra.mxu0 0
        %369 = vmatprep.subr.bf16.mxu0 %v350
        %370 = vmatpush1.bf16.msra.mxu0 %v347
        %371 = vmatprep.subr.bf16.mxu0 0
        %372 = vmatpush2.bf16.msra.mxu0 0
        %373 = vmatprep.subr.bf16.mxu0 0
        %374 = vmatpush2.bf16.msra.mxu0 0
        %375 = vmatprep.subr.bf16.mxu0 0
        %376 = vmatpush2.bf16.msra.mxu0 0
        %377 = vmatprep.subr.bf16.mxu0 0
        %378 = vmatpush2.bf16.msra.mxu0 0
        %379 = vmatprep.subr.bf16.mxu0 0
        %380 = vmatpush2.bf16.msra.mxu0 0
        %381 = vmatprep.subr.bf16.mxu0 0
        %382 = vmatpush2.bf16.msra.mxu0 0
        %383 = vmatprep.subr.bf16.mxu0 0
        %384 = vmatpush2.bf16.msra.mxu0 0
        %385 = vmatprep.subr.bf16.mxu0 0
        %386 = vmatpush2.bf16.msra.mxu0 0
        %387 = vmatprep.mubr.bf16.mxu0 0
        %388 = vmatmul.mubr.bf16.gmra.mxu0 %v344
        %v389 = vpop.f32.mrf.mxu0
        %v390 = vadd.f32 %v273, %v389
        %v391 = vpop.f32.mrf.mxu0
        %v392 = vadd.f32 %v275, %v391
        %v393 = vpop.f32.mrf.mxu0
        %v394 = vpop.f32.mrf.mxu0
        %395 = vdwg.mxu0
        %396 = vmatprep.subr.bf16.mxu0 0
        %397 = vmatpush1.bf16.msra.mxu0 0
        %398 = vmatprep.subr.bf16.mxu0 0
        %399 = vmatpush1.bf16.msra.mxu0 0
        %400 = vmatprep.subr.bf16.mxu0 0
        %401 = vmatpush1.bf16.msra.mxu0 0
        %402 = vmatprep.subr.bf16.mxu0 0
        %403 = vmatpush1.bf16.msra.mxu0 0
        %404 = vmatprep.subr.bf16.mxu0 0
        %405 = vmatpush1.bf16.msra.mxu0 0
        %406 = vmatprep.subr.bf16.mxu0 0
        %407 = vmatpush1.bf16.msra.mxu0 0
        %408 = vmatprep.subr.bf16.mxu0 0
        %409 = vmatpush1.bf16.msra.mxu0 0
        %410 = vmatprep.subr.bf16.mxu0 0
        %411 = vmatpush1.bf16.msra.mxu0 %v353
        %412 = vmatprep.subr.bf16.mxu0 0
        %413 = vmatpush2.bf16.msra.mxu0 0
        %414 = vmatprep.subr.bf16.mxu0 0
        %415 = vmatpush2.bf16.msra.mxu0 0
        %416 = vmatprep.subr.bf16.mxu0 0
        %417 = vmatpush2.bf16.msra.mxu0 0
        %418 = vmatprep.subr.bf16.mxu0 0
        %419 = vmatpush2.bf16.msra.mxu0 0
        %420 = vmatprep.subr.bf16.mxu0 0
        %421 = vmatpush2.bf16.msra.mxu0 0
        %422 = vmatprep.subr.bf16.mxu0 0
        %423 = vmatpush2.bf16.msra.mxu0 0
        %424 = vmatprep.subr.bf16.mxu0 0
        %425 = vmatpush2.bf16.msra.mxu0 0
        %426 = vmatprep.subr.bf16.mxu0 0
        %427 = vmatpush2.bf16.msra.mxu0 0
        %428 = vmatprep.mubr.bf16.mxu0 0
        %429 = vmatmul.mubr.bf16.gmra.mxu0 %v344
        %v430 = vpop.f32.mrf.mxu0
        %v431 = vadd.f32 %v314, %v430
        %v432 = vpop.f32.mrf.mxu0
        %v433 = vpop.f32.mrf.mxu0
        %v434 = vpop.f32.mrf.mxu0
        %435 = vdwg.mxu0
        %v436 = vld [vmem:[%s165] sm:$0xf]
        %v439 = vunpack.c.l.s4 1966171168
        %v440 = vunpack.c.0.s8 %v439
        %v441 = vlaneseq
        %v442 = vshrl.u32 %v441, 7
        %v443 = vsub.s32 %v440, %v442
        %v444 = vrot.slane %v436, %v443
        %v445 = vcombine.high %v444, %v444
        %v447 = vunpack.c.l.s4 1966171168
        %v448 = vunpack.c.0.s8 %v447
        %v449 = vlaneseq
        %v450 = vshrl.u32 %v449, 7
        %v451 = vsub.s32 %v448, %v450
        %v452 = vrot.slane %v444, %v451
        %v454 = vunpack.c.l.s4 1966171168
        %v455 = vunpack.c.0.s8 %v454
        %v456 = vlaneseq
        %v457 = vshrl.u32 %v456, 7
        %v458 = vsub.s32 %v455, %v457
        %v459 = vrot.slane %v445, %v458
        %v460 = vcombine.high %v452, %v452
        %v461 = vcombine.high %v459, %v459
        %462 = vrot.lane.b32.xlu0 %v452, 126
        %v463 = vpop.permute.xlu0 %462
        %464 = vrot.lane.b32.xlu0 %v459, 126
        %v465 = vpop.permute.xlu0 %464
        %466 = vrot.lane.b32.xlu0 %v460, 126
        %v467 = vpop.permute.xlu0 %466
        %468 = vrot.lane.b32.xlu0 %v461, 126
        %v469 = vpop.permute.xlu0 %468
        %vm470 = vcmask 1031168
        %v471 = vsel %vm470, %v463, %v465
        %v472 = vsel %vm470, %v465, %v467
        %v473 = vsel %vm470, %v467, %v469
        %v475 = vsel %vm224, %v172, 0
        %v478 = vsel %vm228, %v471, 0
        %v481 = vsel %vm228, %v472, 0
        %v484 = vsel %vm228, %v473, 0
        %486 = vmatprep.subr.bf16.mxu0 0
        %487 = vmatpush1.bf16.msra.mxu0 0
        %488 = vmatprep.subr.bf16.mxu0 0
        %489 = vmatpush1.bf16.msra.mxu0 0
        %490 = vmatprep.subr.bf16.mxu0 0
        %491 = vmatpush1.bf16.msra.mxu0 0
        %492 = vmatprep.subr.bf16.mxu0 0
        %493 = vmatpush1.bf16.msra.mxu0 0
        %494 = vmatprep.subr.bf16.mxu0 0
        %495 = vmatpush1.bf16.msra.mxu0 0
        %496 = vmatprep.subr.bf16.mxu0 0
        %497 = vmatpush1.bf16.msra.mxu0 0
        %498 = vmatprep.subr.bf16.mxu0 0
        %499 = vmatpush1.bf16.msra.mxu0 0
        %500 = vmatprep.subr.bf16.mxu0 %v481
        %501 = vmatpush1.bf16.msra.mxu0 %v478
        %502 = vmatprep.subr.bf16.mxu0 0
        %503 = vmatpush2.bf16.msra.mxu0 0
        %504 = vmatprep.subr.bf16.mxu0 0
        %505 = vmatpush2.bf16.msra.mxu0 0
        %506 = vmatprep.subr.bf16.mxu0 0
        %507 = vmatpush2.bf16.msra.mxu0 0
        %508 = vmatprep.subr.bf16.mxu0 0
        %509 = vmatpush2.bf16.msra.mxu0 0
        %510 = vmatprep.subr.bf16.mxu0 0
        %511 = vmatpush2.bf16.msra.mxu0 0
        %512 = vmatprep.subr.bf16.mxu0 0
        %513 = vmatpush2.bf16.msra.mxu0 0
        %514 = vmatprep.subr.bf16.mxu0 0
        %515 = vmatpush2.bf16.msra.mxu0 0
        %516 = vmatprep.subr.bf16.mxu0 0
        %517 = vmatpush2.bf16.msra.mxu0 0
        %518 = vmatprep.mubr.bf16.mxu0 0
        %519 = vmatmul.mubr.bf16.gmra.mxu0 %v475
        %v520 = vpop.f32.mrf.mxu0
        %v521 = vadd.f32 0.0, %v520
        %v522 = vpop.f32.mrf.mxu0
        %v523 = vadd.f32 0.0, %v522
        %v524 = vpop.f32.mrf.mxu0
        %v525 = vpop.f32.mrf.mxu0
        %526 = vdwg.mxu0
        %527 = vmatprep.subr.bf16.mxu0 0
        %528 = vmatpush1.bf16.msra.mxu0 0
        %529 = vmatprep.subr.bf16.mxu0 0
        %530 = vmatpush1.bf16.msra.mxu0 0
        %531 = vmatprep.subr.bf16.mxu0 0
        %532 = vmatpush1.bf16.msra.mxu0 0
        %533 = vmatprep.subr.bf16.mxu0 0
        %534 = vmatpush1.bf16.msra.mxu0 0
        %535 = vmatprep.subr.bf16.mxu0 0
        %536 = vmatpush1.bf16.msra.mxu0 0
        %537 = vmatprep.subr.bf16.mxu0 0
        %538 = vmatpush1.bf16.msra.mxu0 0
        %539 = vmatprep.subr.bf16.mxu0 0
        %540 = vmatpush1.bf16.msra.mxu0 0
        %541 = vmatprep.subr.bf16.mxu0 0
        %542 = vmatpush1.bf16.msra.mxu0 %v484
        %543 = vmatprep.subr.bf16.mxu0 0
        %544 = vmatpush2.bf16.msra.mxu0 0
        %545 = vmatprep.subr.bf16.mxu0 0
        %546 = vmatpush2.bf16.msra.mxu0 0
        %547 = vmatprep.subr.bf16.mxu0 0
        %548 = vmatpush2.bf16.msra.mxu0 0
        %549 = vmatprep.subr.bf16.mxu0 0
        %550 = vmatpush2.bf16.msra.mxu0 0
        %551 = vmatprep.subr.bf16.mxu0 0
        %552 = vmatpush2.bf16.msra.mxu0 0
        %553 = vmatprep.subr.bf16.mxu0 0
        %554 = vmatpush2.bf16.msra.mxu0 0
        %555 = vmatprep.subr.bf16.mxu0 0
        %556 = vmatpush2.bf16.msra.mxu0 0
        %557 = vmatprep.subr.bf16.mxu0 0
        %558 = vmatpush2.bf16.msra.mxu0 0
        %559 = vmatprep.mubr.bf16.mxu0 0
        %560 = vmatmul.mubr.bf16.gmra.mxu0 %v475
        %v561 = vpop.f32.mrf.mxu0
        %v562 = vadd.f32 0.0, %v561
        %v563 = vpop.f32.mrf.mxu0
        %v564 = vpop.f32.mrf.mxu0
        %v565 = vpop.f32.mrf.mxu0
        %566 = vdwg.mxu0
        %v567 = vadd.f32 %v390, %v521
        %v568 = vadd.f32 %v392, %v523
        %v569 = vadd.f32 %v431, %v562
        %v570 = vld [vmem:[%s165] sm:$0xf]
        %v573 = vunpack.c.l.s4 1966171168
        %v574 = vunpack.c.0.s8 %v573
        %v575 = vlaneseq
        %v576 = vshrl.u32 %v575, 7
        %v577 = vsub.s32 %v574, %v576
        %v578 = vrot.slane %v570, %v577
        %v579 = vcombine.high %v578, %v578
        %v581 = vunpack.c.l.s4 1966171168
        %v582 = vunpack.c.0.s8 %v581
        %v583 = vlaneseq
        %v584 = vshrl.u32 %v583, 7
        %v585 = vsub.s32 %v582, %v584
        %v586 = vrot.slane %v578, %v585
        %v588 = vunpack.c.l.s4 1966171168
        %v589 = vunpack.c.0.s8 %v588
        %v590 = vlaneseq
        %v591 = vshrl.u32 %v590, 7
        %v592 = vsub.s32 %v589, %v591
        %v593 = vrot.slane %v579, %v592
        %v594 = vcombine.high %v586, %v586
        %v595 = vcombine.high %v593, %v593
        %596 = vrot.lane.b32.xlu0 %v586, 110
        %v597 = vpop.permute.xlu0 %596
        %598 = vrot.lane.b32.xlu0 %v593, 110
        %v599 = vpop.permute.xlu0 %598
        %600 = vrot.lane.b32.xlu0 %v594, 110
        %v601 = vpop.permute.xlu0 %600
        %602 = vrot.lane.b32.xlu0 %v595, 110
        %v603 = vpop.permute.xlu0 %602
        %vm604 = vcmask 900096
        %v605 = vsel %vm604, %v597, %v599
        %v606 = vsel %vm604, %v599, %v601
        %v607 = vsel %vm604, %v601, %v603
        %v609 = vsel %vm224, %v174, 0
        %v612 = vsel %vm228, %v605, 0
        %v615 = vsel %vm228, %v606, 0
        %v618 = vsel %vm228, %v607, 0
        %620 = vmatprep.subr.bf16.mxu0 0
        %621 = vmatpush1.bf16.msra.mxu0 0
        %622 = vmatprep.subr.bf16.mxu0 0
        %623 = vmatpush1.bf16.msra.mxu0 0
        %624 = vmatprep.subr.bf16.mxu0 0
        %625 = vmatpush1.bf16.msra.mxu0 0
        %626 = vmatprep.subr.bf16.mxu0 0
        %627 = vmatpush1.bf16.msra.mxu0 0
        %628 = vmatprep.subr.bf16.mxu0 0
        %629 = vmatpush1.bf16.msra.mxu0 0
        %630 = vmatprep.subr.bf16.mxu0 0
        %631 = vmatpush1.bf16.msra.mxu0 0
        %632 = vmatprep.subr.bf16.mxu0 0
        %633 = vmatpush1.bf16.msra.mxu0 0
        %634 = vmatprep.subr.bf16.mxu0 %v615
        %635 = vmatpush1.bf16.msra.mxu0 %v612
        %636 = vmatprep.subr.bf16.mxu0 0
        %637 = vmatpush2.bf16.msra.mxu0 0
        %638 = vmatprep.subr.bf16.mxu0 0
        %639 = vmatpush2.bf16.msra.mxu0 0
        %640 = vmatprep.subr.bf16.mxu0 0
        %641 = vmatpush2.bf16.msra.mxu0 0
        %642 = vmatprep.subr.bf16.mxu0 0
        %643 = vmatpush2.bf16.msra.mxu0 0
        %644 = vmatprep.subr.bf16.mxu0 0
        %645 = vmatpush2.bf16.msra.mxu0 0
        %646 = vmatprep.subr.bf16.mxu0 0
        %647 = vmatpush2.bf16.msra.mxu0 0
        %648 = vmatprep.subr.bf16.mxu0 0
        %649 = vmatpush2.bf16.msra.mxu0 0
        %650 = vmatprep.subr.bf16.mxu0 0
        %651 = vmatpush2.bf16.msra.mxu0 0
        %652 = vmatprep.mubr.bf16.mxu0 0
        %653 = vmatmul.mubr.bf16.gmra.mxu0 %v609
        %v654 = vpop.f32.mrf.mxu0
        %v655 = vadd.f32 0.0, %v654
        %v656 = vpop.f32.mrf.mxu0
        %v657 = vadd.f32 0.0, %v656
        %v658 = vpop.f32.mrf.mxu0
        %v659 = vpop.f32.mrf.mxu0
        %660 = vdwg.mxu0
        %661 = vmatprep.subr.bf16.mxu0 0
        %662 = vmatpush1.bf16.msra.mxu0 0
        %663 = vmatprep.subr.bf16.mxu0 0
        %664 = vmatpush1.bf16.msra.mxu0 0
        %665 = vmatprep.subr.bf16.mxu0 0
        %666 = vmatpush1.bf16.msra.mxu0 0
        %667 = vmatprep.subr.bf16.mxu0 0
        %668 = vmatpush1.bf16.msra.mxu0 0
        %669 = vmatprep.subr.bf16.mxu0 0
        %670 = vmatpush1.bf16.msra.mxu0 0
        %671 = vmatprep.subr.bf16.mxu0 0
        %672 = vmatpush1.bf16.msra.mxu0 0
        %673 = vmatprep.subr.bf16.mxu0 0
        %674 = vmatpush1.bf16.msra.mxu0 0
        %675 = vmatprep.subr.bf16.mxu0 0
        %676 = vmatpush1.bf16.msra.mxu0 %v618
        %677 = vmatprep.subr.bf16.mxu0 0
        %678 = vmatpush2.bf16.msra.mxu0 0
        %679 = vmatprep.subr.bf16.mxu0 0
        %680 = vmatpush2.bf16.msra.mxu0 0
        %681 = vmatprep.subr.bf16.mxu0 0
        %682 = vmatpush2.bf16.msra.mxu0 0
        %683 = vmatprep.subr.bf16.mxu0 0
        %684 = vmatpush2.bf16.msra.mxu0 0
        %685 = vmatprep.subr.bf16.mxu0 0
        %686 = vmatpush2.bf16.msra.mxu0 0
        %687 = vmatprep.subr.bf16.mxu0 0
        %688 = vmatpush2.bf16.msra.mxu0 0
        %689 = vmatprep.subr.bf16.mxu0 0
        %690 = vmatpush2.bf16.msra.mxu0 0
        %691 = vmatprep.subr.bf16.mxu0 0
        %692 = vmatpush2.bf16.msra.mxu0 0
        %693 = vmatprep.mubr.bf16.mxu0 0
        %694 = vmatmul.mubr.bf16.gmra.mxu0 %v609
        %v695 = vpop.f32.mrf.mxu0
        %v696 = vadd.f32 0.0, %v695
        %v697 = vpop.f32.mrf.mxu0
        %v698 = vpop.f32.mrf.mxu0
        %v699 = vpop.f32.mrf.mxu0
        %700 = vdwg.mxu0
        %v701 = vadd.f32 %v567, %v655
        %v702 = vadd.f32 %v568, %v657
        %v703 = vadd.f32 %v569, %v696
        %v704 = vld [vmem:[%s165] sm:$0xf]
        %v707 = vunpack.c.l.s4 1966171168
        %v708 = vunpack.c.0.s8 %v707
        %v709 = vlaneseq
        %v710 = vshrl.u32 %v709, 7
        %v711 = vsub.s32 %v708, %v710
        %v712 = vrot.slane %v704, %v711
        %v713 = vcombine.high %v712, %v712
        %v715 = vunpack.c.l.s4 1966171168
        %v716 = vunpack.c.0.s8 %v715
        %v717 = vlaneseq
        %v718 = vshrl.u32 %v717, 7
        %v719 = vsub.s32 %v716, %v718
        %v720 = vrot.slane %v712, %v719
        %v722 = vunpack.c.l.s4 1966171168
        %v723 = vunpack.c.0.s8 %v722
        %v724 = vlaneseq
        %v725 = vshrl.u32 %v724, 7
        %v726 = vsub.s32 %v723, %v725
        %v727 = vrot.slane %v713, %v726
        %v728 = vcombine.high %v720, %v720
        %v729 = vcombine.high %v727, %v727
        %730 = vrot.lane.b32.xlu0 %v720, 109
        %v731 = vpop.permute.xlu0 %730
        %732 = vrot.lane.b32.xlu0 %v727, 109
        %v733 = vpop.permute.xlu0 %732
        %734 = vrot.lane.b32.xlu0 %v728, 109
        %v735 = vpop.permute.xlu0 %734
        %736 = vrot.lane.b32.xlu0 %v729, 109
        %v737 = vpop.permute.xlu0 %736
        %vm738 = vcmask 891904
        %v739 = vsel %vm738, %v731, %v733
        %v740 = vsel %vm738, %v733, %v735
        %v741 = vsel %vm738, %v735, %v737
        %v743 = vsel %vm224, %v176, 0
        %v746 = vsel %vm228, %v739, 0
        %v749 = vsel %vm228, %v740, 0
        %v752 = vsel %vm228, %v741, 0
        %754 = vmatprep.subr.bf16.mxu0 0
        %755 = vmatpush1.bf16.msra.mxu0 0
        %756 = vmatprep.subr.bf16.mxu0 0
        %757 = vmatpush1.bf16.msra.mxu0 0
        %758 = vmatprep.subr.bf16.mxu0 0
        %759 = vmatpush1.bf16.msra.mxu0 0
        %760 = vmatprep.subr.bf16.mxu0 0
        %761 = vmatpush1.bf16.msra.mxu0 0
        %762 = vmatprep.subr.bf16.mxu0 0
        %763 = vmatpush1.bf16.msra.mxu0 0
        %764 = vmatprep.subr.bf16.mxu0 0
        %765 = vmatpush1.bf16.msra.mxu0 0
        %766 = vmatprep.subr.bf16.mxu0 0
        %767 = vmatpush1.bf16.msra.mxu0 0
        %768 = vmatprep.subr.bf16.mxu0 %v749
        %769 = vmatpush1.bf16.msra.mxu0 %v746
        %770 = vmatprep.subr.bf16.mxu0 0
        %771 = vmatpush2.bf16.msra.mxu0 0
        %772 = vmatprep.subr.bf16.mxu0 0
        %773 = vmatpush2.bf16.msra.mxu0 0
        %774 = vmatprep.subr.bf16.mxu0 0
        %775 = vmatpush2.bf16.msra.mxu0 0
        %776 = vmatprep.subr.bf16.mxu0 0
        %777 = vmatpush2.bf16.msra.mxu0 0
        %778 = vmatprep.subr.bf16.mxu0 0
        %779 = vmatpush2.bf16.msra.mxu0 0
        %780 = vmatprep.subr.bf16.mxu0 0
        %781 = vmatpush2.bf16.msra.mxu0 0
        %782 = vmatprep.subr.bf16.mxu0 0
        %783 = vmatpush2.bf16.msra.mxu0 0
        %784 = vmatprep.subr.bf16.mxu0 0
        %785 = vmatpush2.bf16.msra.mxu0 0
        %786 = vmatprep.mubr.bf16.mxu0 0
        %787 = vmatmul.mubr.bf16.gmra.mxu0 %v743
        %v788 = vpop.f32.mrf.mxu0
        %v789 = vadd.f32 0.0, %v788
        %v790 = vpop.f32.mrf.mxu0
        %v791 = vadd.f32 0.0, %v790
        %v792 = vpop.f32.mrf.mxu0
        %v793 = vpop.f32.mrf.mxu0
        %794 = vdwg.mxu0
        %795 = vmatprep.subr.bf16.mxu0 0
        %796 = vmatpush1.bf16.msra.mxu0 0
        %797 = vmatprep.subr.bf16.mxu0 0
        %798 = vmatpush1.bf16.msra.mxu0 0
        %799 = vmatprep.subr.bf16.mxu0 0
        %800 = vmatpush1.bf16.msra.mxu0 0
        %801 = vmatprep.subr.bf16.mxu0 0
        %802 = vmatpush1.bf16.msra.mxu0 0
        %803 = vmatprep.subr.bf16.mxu0 0
        %804 = vmatpush1.bf16.msra.mxu0 0
        %805 = vmatprep.subr.bf16.mxu0 0
        %806 = vmatpush1.bf16.msra.mxu0 0
        %807 = vmatprep.subr.bf16.mxu0 0
        %808 = vmatpush1.bf16.msra.mxu0 0
        %809 = vmatprep.subr.bf16.mxu0 0
        %810 = vmatpush1.bf16.msra.mxu0 %v752
        %811 = vmatprep.subr.bf16.mxu0 0
        %812 = vmatpush2.bf16.msra.mxu0 0
        %813 = vmatprep.subr.bf16.mxu0 0
        %814 = vmatpush2.bf16.msra.mxu0 0
        %815 = vmatprep.subr.bf16.mxu0 0
        %816 = vmatpush2.bf16.msra.mxu0 0
        %817 = vmatprep.subr.bf16.mxu0 0
        %818 = vmatpush2.bf16.msra.mxu0 0
        %819 = vmatprep.subr.bf16.mxu0 0
        %820 = vmatpush2.bf16.msra.mxu0 0
        %821 = vmatprep.subr.bf16.mxu0 0
        %822 = vmatpush2.bf16.msra.mxu0 0
        %823 = vmatprep.subr.bf16.mxu0 0
        %824 = vmatpush2.bf16.msra.mxu0 0
        %825 = vmatprep.subr.bf16.mxu0 0
        %826 = vmatpush2.bf16.msra.mxu0 0
        %827 = vmatprep.mubr.bf16.mxu0 0
        %828 = vmatmul.mubr.bf16.gmra.mxu0 %v743
        %v829 = vpop.f32.mrf.mxu0
        %v830 = vadd.f32 0.0, %v829
        %v831 = vpop.f32.mrf.mxu0
        %v832 = vpop.f32.mrf.mxu0
        %v833 = vpop.f32.mrf.mxu0
        %834 = vdwg.mxu0
        %v835 = vadd.f32 %v701, %v789
        %v836 = vadd.f32 %v702, %v791
        %v837 = vadd.f32 %v703, %v830
        %v838 = vld [vmem:[%s165] sm:$0xf]
        %v841 = vunpack.c.l.s4 1966171168
        %v842 = vunpack.c.0.s8 %v841
        %v843 = vlaneseq
        %v844 = vshrl.u32 %v843, 7
        %v845 = vsub.s32 %v842, %v844
        %v846 = vrot.slane %v838, %v845
        %v847 = vcombine.high %v846, %v846
        %v849 = vunpack.c.l.s4 1966171168
        %v850 = vunpack.c.0.s8 %v849
        %v851 = vlaneseq
        %v852 = vshrl.u32 %v851, 7
        %v853 = vsub.s32 %v850, %v852
        %v854 = vrot.slane %v846, %v853
        %v856 = vunpack.c.l.s4 1966171168
        %v857 = vunpack.c.0.s8 %v856
        %v858 = vlaneseq
        %v859 = vshrl.u32 %v858, 7
        %v860 = vsub.s32 %v857, %v859
        %v861 = vrot.slane %v847, %v860
        %v862 = vcombine.high %v854, %v854
        %v863 = vcombine.high %v861, %v861
        %864 = vrot.lane.b32.xlu0 %v854, 108
        %v865 = vpop.permute.xlu0 %864
        %866 = vrot.lane.b32.xlu0 %v861, 108
        %v867 = vpop.permute.xlu0 %866
        %868 = vrot.lane.b32.xlu0 %v862, 108
        %v869 = vpop.permute.xlu0 %868
        %870 = vrot.lane.b32.xlu0 %v863, 108
        %v871 = vpop.permute.xlu0 %870
        %vm872 = vcmask 883712
        %v873 = vsel %vm872, %v865, %v867
        %v874 = vsel %vm872, %v867, %v869
        %v875 = vsel %vm872, %v869, %v871
        %v877 = vsel %vm224, %v178, 0
        %v880 = vsel %vm228, %v873, 0
        %v883 = vsel %vm228, %v874, 0
        %v886 = vsel %vm228, %v875, 0
        %888 = vmatprep.subr.bf16.mxu0 0
        %889 = vmatpush1.bf16.msra.mxu0 0
        %890 = vmatprep.subr.bf16.mxu0 0
        %891 = vmatpush1.bf16.msra.mxu0 0
        %892 = vmatprep.subr.bf16.mxu0 0
        %893 = vmatpush1.bf16.msra.mxu0 0
        %894 = vmatprep.subr.bf16.mxu0 0
        %895 = vmatpush1.bf16.msra.mxu0 0
        %896 = vmatprep.subr.bf16.mxu0 0
        %897 = vmatpush1.bf16.msra.mxu0 0
        %898 = vmatprep.subr.bf16.mxu0 0
        %899 = vmatpush1.bf16.msra.mxu0 0
        %900 = vmatprep.subr.bf16.mxu0 0
        %901 = vmatpush1.bf16.msra.mxu0 0
        %902 = vmatprep.subr.bf16.mxu0 %v883
        %903 = vmatpush1.bf16.msra.mxu0 %v880
        %904 = vmatprep.subr.bf16.mxu0 0
        %905 = vmatpush2.bf16.msra.mxu0 0
        %906 = vmatprep.subr.bf16.mxu0 0
        %907 = vmatpush2.bf16.msra.mxu0 0
        %908 = vmatprep.subr.bf16.mxu0 0
        %909 = vmatpush2.bf16.msra.mxu0 0
        %910 = vmatprep.subr.bf16.mxu0 0
        %911 = vmatpush2.bf16.msra.mxu0 0
        %912 = vmatprep.subr.bf16.mxu0 0
        %913 = vmatpush2.bf16.msra.mxu0 0
        %914 = vmatprep.subr.bf16.mxu0 0
        %915 = vmatpush2.bf16.msra.mxu0 0
        %916 = vmatprep.subr.bf16.mxu0 0
        %917 = vmatpush2.bf16.msra.mxu0 0
        %918 = vmatprep.subr.bf16.mxu0 0
        %919 = vmatpush2.bf16.msra.mxu0 0
        %920 = vmatprep.mubr.bf16.mxu0 0
        %921 = vmatmul.mubr.bf16.gmra.mxu0 %v877
        %v922 = vpop.f32.mrf.mxu0
        %v923 = vadd.f32 0.0, %v922
        %v924 = vpop.f32.mrf.mxu0
        %v925 = vadd.f32 0.0, %v924
        %v926 = vpop.f32.mrf.mxu0
        %v927 = vpop.f32.mrf.mxu0
        %928 = vdwg.mxu0
        %929 = vmatprep.subr.bf16.mxu0 0
        %930 = vmatpush1.bf16.msra.mxu0 0
        %931 = vmatprep.subr.bf16.mxu0 0
        %932 = vmatpush1.bf16.msra.mxu0 0
        %933 = vmatprep.subr.bf16.mxu0 0
        %934 = vmatpush1.bf16.msra.mxu0 0
        %935 = vmatprep.subr.bf16.mxu0 0
        %936 = vmatpush1.bf16.msra.mxu0 0
        %937 = vmatprep.subr.bf16.mxu0 0
        %938 = vmatpush1.bf16.msra.mxu0 0
        %939 = vmatprep.subr.bf16.mxu0 0
        %940 = vmatpush1.bf16.msra.mxu0 0
        %941 = vmatprep.subr.bf16.mxu0 0
        %942 = vmatpush1.bf16.msra.mxu0 0
        %943 = vmatprep.subr.bf16.mxu0 0
        %944 = vmatpush1.bf16.msra.mxu0 %v886
        %945 = vmatprep.subr.bf16.mxu0 0
        %946 = vmatpush2.bf16.msra.mxu0 0
        %947 = vmatprep.subr.bf16.mxu0 0
        %948 = vmatpush2.bf16.msra.mxu0 0
        %949 = vmatprep.subr.bf16.mxu0 0
        %950 = vmatpush2.bf16.msra.mxu0 0
        %951 = vmatprep.subr.bf16.mxu0 0
        %952 = vmatpush2.bf16.msra.mxu0 0
        %953 = vmatprep.subr.bf16.mxu0 0
        %954 = vmatpush2.bf16.msra.mxu0 0
        %955 = vmatprep.subr.bf16.mxu0 0
        %956 = vmatpush2.bf16.msra.mxu0 0
        %957 = vmatprep.subr.bf16.mxu0 0
        %958 = vmatpush2.bf16.msra.mxu0 0
        %959 = vmatprep.subr.bf16.mxu0 0
        %960 = vmatpush2.bf16.msra.mxu0 0
        %961 = vmatprep.mubr.bf16.mxu0 0
        %962 = vmatmul.mubr.bf16.gmra.mxu0 %v877
        %v963 = vpop.f32.mrf.mxu0
        %v964 = vadd.f32 0.0, %v963
        %v965 = vpop.f32.mrf.mxu0
        %v966 = vpop.f32.mrf.mxu0
        %v967 = vpop.f32.mrf.mxu0
        %968 = vdwg.mxu0
        %v969 = vadd.f32 %v835, %v923
        %v970 = vadd.f32 %v836, %v925
        %v971 = vadd.f32 %v837, %v964
        %v972 = vld [vmem:[%s165] sm:$0xf]
        %v975 = vunpack.c.l.s4 1966171168
        %v976 = vunpack.c.0.s8 %v975
        %v977 = vlaneseq
        %v978 = vshrl.u32 %v977, 7
        %v979 = vsub.s32 %v976, %v978
        %v980 = vrot.slane %v972, %v979
        %v981 = vcombine.high %v980, %v980
        %v983 = vunpack.c.l.s4 1966171168
        %v984 = vunpack.c.0.s8 %v983
        %v985 = vlaneseq
        %v986 = vshrl.u32 %v985, 7
        %v987 = vsub.s32 %v984, %v986
        %v988 = vrot.slane %v980, %v987
        %v990 = vunpack.c.l.s4 1966171168
        %v991 = vunpack.c.0.s8 %v990
        %v992 = vlaneseq
        %v993 = vshrl.u32 %v992, 7
        %v994 = vsub.s32 %v991, %v993
        %v995 = vrot.slane %v981, %v994
        %v996 = vcombine.high %v988, %v988
        %v997 = vcombine.high %v995, %v995
        %998 = vrot.lane.b32.xlu0 %v988, 92
        %v999 = vpop.permute.xlu0 %998
        %1000 = vrot.lane.b32.xlu0 %v995, 92
        %v1001 = vpop.permute.xlu0 %1000
        %1002 = vrot.lane.b32.xlu0 %v996, 92
        %v1003 = vpop.permute.xlu0 %1002
        %1004 = vrot.lane.b32.xlu0 %v997, 92
        %v1005 = vpop.permute.xlu0 %1004
        %vm1006 = vcmask 752640
        %v1007 = vsel %vm1006, %v999, %v1001
        %v1008 = vsel %vm1006, %v1001, %v1003
        %v1009 = vsel %vm1006, %v1003, %v1005
        %v1011 = vsel %vm224, %v180, 0
        %v1014 = vsel %vm228, %v1007, 0
        %v1017 = vsel %vm228, %v1008, 0
        %v1020 = vsel %vm228, %v1009, 0
        %1022 = vmatprep.subr.bf16.mxu0 0
        %1023 = vmatpush1.bf16.msra.mxu0 0
        %1024 = vmatprep.subr.bf16.mxu0 0
        %1025 = vmatpush1.bf16.msra.mxu0 0
        %1026 = vmatprep.subr.bf16.mxu0 0
        %1027 = vmatpush1.bf16.msra.mxu0 0
        %1028 = vmatprep.subr.bf16.mxu0 0
        %1029 = vmatpush1.bf16.msra.mxu0 0
        %1030 = vmatprep.subr.bf16.mxu0 0
        %1031 = vmatpush1.bf16.msra.mxu0 0
        %1032 = vmatprep.subr.bf16.mxu0 0
        %1033 = vmatpush1.bf16.msra.mxu0 0
        %1034 = vmatprep.subr.bf16.mxu0 0
        %1035 = vmatpush1.bf16.msra.mxu0 0
        %1036 = vmatprep.subr.bf16.mxu0 %v1017
        %1037 = vmatpush1.bf16.msra.mxu0 %v1014
        %1038 = vmatprep.subr.bf16.mxu0 0
        %1039 = vmatpush2.bf16.msra.mxu0 0
        %1040 = vmatprep.subr.bf16.mxu0 0
        %1041 = vmatpush2.bf16.msra.mxu0 0
        %1042 = vmatprep.subr.bf16.mxu0 0
        %1043 = vmatpush2.bf16.msra.mxu0 0
        %1044 = vmatprep.subr.bf16.mxu0 0
        %1045 = vmatpush2.bf16.msra.mxu0 0
        %1046 = vmatprep.subr.bf16.mxu0 0
        %1047 = vmatpush2.bf16.msra.mxu0 0
        %1048 = vmatprep.subr.bf16.mxu0 0
        %1049 = vmatpush2.bf16.msra.mxu0 0
        %1050 = vmatprep.subr.bf16.mxu0 0
        %1051 = vmatpush2.bf16.msra.mxu0 0
        %1052 = vmatprep.subr.bf16.mxu0 0
        %1053 = vmatpush2.bf16.msra.mxu0 0
        %1054 = vmatprep.mubr.bf16.mxu0 0
        %1055 = vmatmul.mubr.bf16.gmra.mxu0 %v1011
        %v1056 = vpop.f32.mrf.mxu0
        %v1057 = vadd.f32 0.0, %v1056
        %v1058 = vpop.f32.mrf.mxu0
        %v1059 = vadd.f32 0.0, %v1058
        %v1060 = vpop.f32.mrf.mxu0
        %v1061 = vpop.f32.mrf.mxu0
        %1062 = vdwg.mxu0
        %1063 = vmatprep.subr.bf16.mxu0 0
        %1064 = vmatpush1.bf16.msra.mxu0 0
        %1065 = vmatprep.subr.bf16.mxu0 0
        %1066 = vmatpush1.bf16.msra.mxu0 0
        %1067 = vmatprep.subr.bf16.mxu0 0
        %1068 = vmatpush1.bf16.msra.mxu0 0
        %1069 = vmatprep.subr.bf16.mxu0 0
        %1070 = vmatpush1.bf16.msra.mxu0 0
        %1071 = vmatprep.subr.bf16.mxu0 0
        %1072 = vmatpush1.bf16.msra.mxu0 0
        %1073 = vmatprep.subr.bf16.mxu0 0
        %1074 = vmatpush1.bf16.msra.mxu0 0
        %1075 = vmatprep.subr.bf16.mxu0 0
        %1076 = vmatpush1.bf16.msra.mxu0 0
        %1077 = vmatprep.subr.bf16.mxu0 0
        %1078 = vmatpush1.bf16.msra.mxu0 %v1020
        %1079 = vmatprep.subr.bf16.mxu0 0
        %1080 = vmatpush2.bf16.msra.mxu0 0
        %1081 = vmatprep.subr.bf16.mxu0 0
        %1082 = vmatpush2.bf16.msra.mxu0 0
        %1083 = vmatprep.subr.bf16.mxu0 0
        %1084 = vmatpush2.bf16.msra.mxu0 0
        %1085 = vmatprep.subr.bf16.mxu0 0
        %1086 = vmatpush2.bf16.msra.mxu0 0
        %1087 = vmatprep.subr.bf16.mxu0 0
        %1088 = vmatpush2.bf16.msra.mxu0 0
        %1089 = vmatprep.subr.bf16.mxu0 0
        %1090 = vmatpush2.bf16.msra.mxu0 0
        %1091 = vmatprep.subr.bf16.mxu0 0
        %1092 = vmatpush2.bf16.msra.mxu0 0
        %1093 = vmatprep.subr.bf16.mxu0 0
        %1094 = vmatpush2.bf16.msra.mxu0 0
        %1095 = vmatprep.mubr.bf16.mxu0 0
        %1096 = vmatmul.mubr.bf16.gmra.mxu0 %v1011
        %v1097 = vpop.f32.mrf.mxu0
        %v1098 = vadd.f32 0.0, %v1097
        %v1099 = vpop.f32.mrf.mxu0
        %v1100 = vpop.f32.mrf.mxu0
        %v1101 = vpop.f32.mrf.mxu0
        %1102 = vdwg.mxu0
        %v1103 = vadd.f32 %v969, %v1057
        %v1104 = vadd.f32 %v970, %v1059
        %v1105 = vadd.f32 %v971, %v1098
        %v1106 = vld [vmem:[%s165] sm:$0xf]
        %v1109 = vunpack.c.l.s4 1966171168
        %v1110 = vunpack.c.0.s8 %v1109
        %v1111 = vlaneseq
        %v1112 = vshrl.u32 %v1111, 7
        %v1113 = vsub.s32 %v1110, %v1112
        %v1114 = vrot.slane %v1106, %v1113
        %v1115 = vcombine.high %v1114, %v1114
        %v1117 = vunpack.c.l.s4 1966171168
        %v1118 = vunpack.c.0.s8 %v1117
        %v1119 = vlaneseq
        %v1120 = vshrl.u32 %v1119, 7
        %v1121 = vsub.s32 %v1118, %v1120
        %v1122 = vrot.slane %v1114, %v1121
        %v1124 = vunpack.c.l.s4 1966171168
        %v1125 = vunpack.c.0.s8 %v1124
        %v1126 = vlaneseq
        %v1127 = vshrl.u32 %v1126, 7
        %v1128 = vsub.s32 %v1125, %v1127
        %v1129 = vrot.slane %v1115, %v1128
        %v1130 = vcombine.high %v1122, %v1122
        %v1131 = vcombine.high %v1129, %v1129
        %1132 = vrot.lane.b32.xlu0 %v1122, 91
        %v1133 = vpop.permute.xlu0 %1132
        %1134 = vrot.lane.b32.xlu0 %v1129, 91
        %v1135 = vpop.permute.xlu0 %1134
        %1136 = vrot.lane.b32.xlu0 %v1130, 91
        %v1137 = vpop.permute.xlu0 %1136
        %1138 = vrot.lane.b32.xlu0 %v1131, 91
        %v1139 = vpop.permute.xlu0 %1138
        %vm1140 = vcmask 744448
        %v1141 = vsel %vm1140, %v1133, %v1135
        %v1142 = vsel %vm1140, %v1135, %v1137
        %v1143 = vsel %vm1140, %v1137, %v1139
        %v1145 = vsel %vm224, %v182, 0
        %v1148 = vsel %vm228, %v1141, 0
        %v1151 = vsel %vm228, %v1142, 0
        %v1154 = vsel %vm228, %v1143, 0
        %1156 = vmatprep.subr.bf16.mxu0 0
        %1157 = vmatpush1.bf16.msra.mxu0 0
        %1158 = vmatprep.subr.bf16.mxu0 0
        %1159 = vmatpush1.bf16.msra.mxu0 0
        %1160 = vmatprep.subr.bf16.mxu0 0
        %1161 = vmatpush1.bf16.msra.mxu0 0
        %1162 = vmatprep.subr.bf16.mxu0 0
        %1163 = vmatpush1.bf16.msra.mxu0 0
        %1164 = vmatprep.subr.bf16.mxu0 0
        %1165 = vmatpush1.bf16.msra.mxu0 0
        %1166 = vmatprep.subr.bf16.mxu0 0
        %1167 = vmatpush1.bf16.msra.mxu0 0
        %1168 = vmatprep.subr.bf16.mxu0 0
        %1169 = vmatpush1.bf16.msra.mxu0 0
        %1170 = vmatprep.subr.bf16.mxu0 %v1151
        %1171 = vmatpush1.bf16.msra.mxu0 %v1148
        %1172 = vmatprep.subr.bf16.mxu0 0
        %1173 = vmatpush2.bf16.msra.mxu0 0
        %1174 = vmatprep.subr.bf16.mxu0 0
        %1175 = vmatpush2.bf16.msra.mxu0 0
        %1176 = vmatprep.subr.bf16.mxu0 0
        %1177 = vmatpush2.bf16.msra.mxu0 0
        %1178 = vmatprep.subr.bf16.mxu0 0
        %1179 = vmatpush2.bf16.msra.mxu0 0
        %1180 = vmatprep.subr.bf16.mxu0 0
        %1181 = vmatpush2.bf16.msra.mxu0 0
        %1182 = vmatprep.subr.bf16.mxu0 0
        %1183 = vmatpush2.bf16.msra.mxu0 0
        %1184 = vmatprep.subr.bf16.mxu0 0
        %1185 = vmatpush2.bf16.msra.mxu0 0
        %1186 = vmatprep.subr.bf16.mxu0 0
        %1187 = vmatpush2.bf16.msra.mxu0 0
        %1188 = vmatprep.mubr.bf16.mxu0 0
        %1189 = vmatmul.mubr.bf16.gmra.mxu0 %v1145
        %v1190 = vpop.f32.mrf.mxu0
        %v1191 = vadd.f32 0.0, %v1190
        %v1192 = vpop.f32.mrf.mxu0
        %v1193 = vadd.f32 0.0, %v1192
        %v1194 = vpop.f32.mrf.mxu0
        %v1195 = vpop.f32.mrf.mxu0
        %1196 = vdwg.mxu0
        %1197 = vmatprep.subr.bf16.mxu0 0
        %1198 = vmatpush1.bf16.msra.mxu0 0
        %1199 = vmatprep.subr.bf16.mxu0 0
        %1200 = vmatpush1.bf16.msra.mxu0 0
        %1201 = vmatprep.subr.bf16.mxu0 0
        %1202 = vmatpush1.bf16.msra.mxu0 0
        %1203 = vmatprep.subr.bf16.mxu0 0
        %1204 = vmatpush1.bf16.msra.mxu0 0
        %1205 = vmatprep.subr.bf16.mxu0 0
        %1206 = vmatpush1.bf16.msra.mxu0 0
        %1207 = vmatprep.subr.bf16.mxu0 0
        %1208 = vmatpush1.bf16.msra.mxu0 0
        %1209 = vmatprep.subr.bf16.mxu0 0
        %1210 = vmatpush1.bf16.msra.mxu0 0
        %1211 = vmatprep.subr.bf16.mxu0 0
        %1212 = vmatpush1.bf16.msra.mxu0 %v1154
        %1213 = vmatprep.subr.bf16.mxu0 0
        %1214 = vmatpush2.bf16.msra.mxu0 0
        %1215 = vmatprep.subr.bf16.mxu0 0
        %1216 = vmatpush2.bf16.msra.mxu0 0
        %1217 = vmatprep.subr.bf16.mxu0 0
        %1218 = vmatpush2.bf16.msra.mxu0 0
        %1219 = vmatprep.subr.bf16.mxu0 0
        %1220 = vmatpush2.bf16.msra.mxu0 0
        %1221 = vmatprep.subr.bf16.mxu0 0
        %1222 = vmatpush2.bf16.msra.mxu0 0
        %1223 = vmatprep.subr.bf16.mxu0 0
        %1224 = vmatpush2.bf16.msra.mxu0 0
        %1225 = vmatprep.subr.bf16.mxu0 0
        %1226 = vmatpush2.bf16.msra.mxu0 0
        %1227 = vmatprep.subr.bf16.mxu0 0
        %1228 = vmatpush2.bf16.msra.mxu0 0
        %1229 = vmatprep.mubr.bf16.mxu0 0
        %1230 = vmatmul.mubr.bf16.gmra.mxu0 %v1145
        %v1231 = vpop.f32.mrf.mxu0
        %v1232 = vadd.f32 0.0, %v1231
        %v1233 = vpop.f32.mrf.mxu0
        %v1234 = vpop.f32.mrf.mxu0
        %v1235 = vpop.f32.mrf.mxu0
        %1236 = vdwg.mxu0
        %v1237 = vadd.f32 %v1103, %v1191
        %v1238 = vadd.f32 %v1104, %v1193
        %v1239 = vadd.f32 %v1105, %v1232
        %v1240 = vld [vmem:[%s165] sm:$0xf]
        %v1243 = vunpack.c.l.s4 1966171168
        %v1244 = vunpack.c.0.s8 %v1243
        %v1245 = vlaneseq
        %v1246 = vshrl.u32 %v1245, 7
        %v1247 = vsub.s32 %v1244, %v1246
        %v1248 = vrot.slane %v1240, %v1247
        %v1249 = vcombine.high %v1248, %v1248
        %v1251 = vunpack.c.l.s4 1966171168
        %v1252 = vunpack.c.0.s8 %v1251
        %v1253 = vlaneseq
        %v1254 = vshrl.u32 %v1253, 7
        %v1255 = vsub.s32 %v1252, %v1254
        %v1256 = vrot.slane %v1248, %v1255
        %v1258 = vunpack.c.l.s4 1966171168
        %v1259 = vunpack.c.0.s8 %v1258
        %v1260 = vlaneseq
        %v1261 = vshrl.u32 %v1260, 7
        %v1262 = vsub.s32 %v1259, %v1261
        %v1263 = vrot.slane %v1249, %v1262
        %v1264 = vcombine.high %v1256, %v1256
        %v1265 = vcombine.high %v1263, %v1263
        %1266 = vrot.lane.b32.xlu0 %v1256, 90
        %v1267 = vpop.permute.xlu0 %1266
        %1268 = vrot.lane.b32.xlu0 %v1263, 90
        %v1269 = vpop.permute.xlu0 %1268
        %1270 = vrot.lane.b32.xlu0 %v1264, 90
        %v1271 = vpop.permute.xlu0 %1270
        %1272 = vrot.lane.b32.xlu0 %v1265, 90
        %v1273 = vpop.permute.xlu0 %1272
        %vm1274 = vcmask 736256
        %v1275 = vsel %vm1274, %v1267, %v1269
        %v1276 = vsel %vm1274, %v1269, %v1271
        %v1277 = vsel %vm1274, %v1271, %v1273
        %v1279 = vsel %vm224, %v184, 0
        %v1282 = vsel %vm228, %v1275, 0
        %v1285 = vsel %vm228, %v1276, 0
        %v1288 = vsel %vm228, %v1277, 0
        %1290 = vmatprep.subr.bf16.mxu0 0
        %1291 = vmatpush1.bf16.msra.mxu0 0
        %1292 = vmatprep.subr.bf16.mxu0 0
        %1293 = vmatpush1.bf16.msra.mxu0 0
        %1294 = vmatprep.subr.bf16.mxu0 0
        %1295 = vmatpush1.bf16.msra.mxu0 0
        %1296 = vmatprep.subr.bf16.mxu0 0
        %1297 = vmatpush1.bf16.msra.mxu0 0
        %1298 = vmatprep.subr.bf16.mxu0 0
        %1299 = vmatpush1.bf16.msra.mxu0 0
        %1300 = vmatprep.subr.bf16.mxu0 0
        %1301 = vmatpush1.bf16.msra.mxu0 0
        %1302 = vmatprep.subr.bf16.mxu0 0
        %1303 = vmatpush1.bf16.msra.mxu0 0
        %1304 = vmatprep.subr.bf16.mxu0 %v1285
        %1305 = vmatpush1.bf16.msra.mxu0 %v1282
        %1306 = vmatprep.subr.bf16.mxu0 0
        %1307 = vmatpush2.bf16.msra.mxu0 0
        %1308 = vmatprep.subr.bf16.mxu0 0
        %1309 = vmatpush2.bf16.msra.mxu0 0
        %1310 = vmatprep.subr.bf16.mxu0 0
        %1311 = vmatpush2.bf16.msra.mxu0 0
        %1312 = vmatprep.subr.bf16.mxu0 0
        %1313 = vmatpush2.bf16.msra.mxu0 0
        %1314 = vmatprep.subr.bf16.mxu0 0
        %1315 = vmatpush2.bf16.msra.mxu0 0
        %1316 = vmatprep.subr.bf16.mxu0 0
        %1317 = vmatpush2.bf16.msra.mxu0 0
        %1318 = vmatprep.subr.bf16.mxu0 0
        %1319 = vmatpush2.bf16.msra.mxu0 0
        %1320 = vmatprep.subr.bf16.mxu0 0
        %1321 = vmatpush2.bf16.msra.mxu0 0
        %1322 = vmatprep.mubr.bf16.mxu0 0
        %1323 = vmatmul.mubr.bf16.gmra.mxu0 %v1279
        %v1324 = vpop.f32.mrf.mxu0
        %v1325 = vadd.f32 0.0, %v1324
        %v1326 = vpop.f32.mrf.mxu0
        %v1327 = vadd.f32 0.0, %v1326
        %v1328 = vpop.f32.mrf.mxu0
        %v1329 = vpop.f32.mrf.mxu0
        %1330 = vdwg.mxu0
        %1331 = vmatprep.subr.bf16.mxu0 0
        %1332 = vmatpush1.bf16.msra.mxu0 0
        %1333 = vmatprep.subr.bf16.mxu0 0
        %1334 = vmatpush1.bf16.msra.mxu0 0
        %1335 = vmatprep.subr.bf16.mxu0 0
        %1336 = vmatpush1.bf16.msra.mxu0 0
        %1337 = vmatprep.subr.bf16.mxu0 0
        %1338 = vmatpush1.bf16.msra.mxu0 0
        %1339 = vmatprep.subr.bf16.mxu0 0
        %1340 = vmatpush1.bf16.msra.mxu0 0
        %1341 = vmatprep.subr.bf16.mxu0 0
        %1342 = vmatpush1.bf16.msra.mxu0 0
        %1343 = vmatprep.subr.bf16.mxu0 0
        %1344 = vmatpush1.bf16.msra.mxu0 0
        %1345 = vmatprep.subr.bf16.mxu0 0
        %1346 = vmatpush1.bf16.msra.mxu0 %v1288
        %1347 = vmatprep.subr.bf16.mxu0 0
        %1348 = vmatpush2.bf16.msra.mxu0 0
        %1349 = vmatprep.subr.bf16.mxu0 0
        %1350 = vmatpush2.bf16.msra.mxu0 0
        %1351 = vmatprep.subr.bf16.mxu0 0
        %1352 = vmatpush2.bf16.msra.mxu0 0
        %1353 = vmatprep.subr.bf16.mxu0 0
        %1354 = vmatpush2.bf16.msra.mxu0 0
        %1355 = vmatprep.subr.bf16.mxu0 0
        %1356 = vmatpush2.bf16.msra.mxu0 0
        %1357 = vmatprep.subr.bf16.mxu0 0
        %1358 = vmatpush2.bf16.msra.mxu0 0
        %1359 = vmatprep.subr.bf16.mxu0 0
        %1360 = vmatpush2.bf16.msra.mxu0 0
        %1361 = vmatprep.subr.bf16.mxu0 0
        %1362 = vmatpush2.bf16.msra.mxu0 0
        %1363 = vmatprep.mubr.bf16.mxu0 0
        %1364 = vmatmul.mubr.bf16.gmra.mxu0 %v1279
        %v1365 = vpop.f32.mrf.mxu0
        %v1366 = vadd.f32 0.0, %v1365
        %v1367 = vpop.f32.mrf.mxu0
        %v1368 = vpop.f32.mrf.mxu0
        %v1369 = vpop.f32.mrf.mxu0
        %1370 = vdwg.mxu0
        %v1371 = vadd.f32 %v1237, %v1325
        %v1372 = vadd.f32 %v1238, %v1327
        %v1373 = vadd.f32 %v1239, %v1366
        %1375 = vset.pattern.permute.xlu0 0
        %1376 = vperm.xlu0 %1375, %v167
        %v1377 = vpop.permute.xlu0 %1376
        %v1379 = vadd.f32 %v1371, %v1377
        %v1380 = vadd.f32 %v1372, %v1377
        %v1381 = vadd.f32 %v1373, %v1377
        %1382 = vst [vmem:[%s161] sm:$0xff] %v1379
        %1383 = vst [vmem:[%s161 + $0x8] sm:$0xff] %v1380
        %1384 = vst [vmem:[%s161 + $0x10] sm:$0xff] %v1381
        %s1385 = sand.u32 %s93, 1
        %s1386 = scalar_lea.sflag [#allocation3], %s1385
        %s1387 = sand.u32 %s93, 1
        %s1388 = smul.addr %s1387, 24
        %s1389 = scalar_lea.vmem [#allocation2], %s1388
        // Predicated region
        $region33: #{tpu_custom_call.1} parent=31 // pred_check
          %p1390 = pneg %p103
        $region34: #{tpu_custom_call.1} parent=31 // pred_check_branch
          %1392 = sbr.rel (%p1390) target = $region36
        $region35: #{tpu_custom_call.1} parent=31 // pred_region
          %s1394 = ssub.s32 384, 384
          %1395 = vsyncadd %s1386, %s1394
          %s1396 = smul.addr %s17, 3
          %s1397 = smul.addr %s1396, 128
          %s1398 = scalar_lea.hbm %s3, %s1397
          %s1400 = sshll.u32 %s1389, 4
          %s1401 = int_to_ptr.vmem [resolvable:$true] %s1400
          %1403 = dma.vmem_to_hbm [thread:$0]  %s1401, 384, %s1398, %s1386
        $region36: #{tpu_custom_call.1} parent=31 // pred_fallthru
          _
      $region32: #{tpu_custom_call.1} parent=5 // pred_fallthru
        _
      %p1404 = scmp.le.s32.totalorder 2, %s12
      // Predicated region
      $region37: #{tpu_custom_call.1} parent=5 // pred_check
        %p1405 = pneg %p1404
      $region38: #{tpu_custom_call.1} parent=5 // pred_check_branch
        %1407 = sbr.rel (%p1405) target = $region40
      $region39: #{tpu_custom_call.1} parent=5 // pred_region
        %s1408 = ssub.s32 %s12, 2
        // Predicated region
        $region41: #{tpu_custom_call.1} parent=39 // pred_check
          %p1409 = pneg %p109
        $region42: #{tpu_custom_call.1} parent=39 // pred_check_branch
          %1411 = sbr.rel (%p1409) target = $region44
        $region43: #{tpu_custom_call.1} parent=39 // pred_region
          %s1412 = sand.u32 %s94, 1
          %s1413 = scalar_lea.sflag [#allocation3], %s1412
          %s1414 = sand.u32 %s94, 1
          %s1415 = smul.addr %s1414, 24
          %s1416 = scalar_lea.vmem [#allocation2], %s1415
          %1417 = dma.done %s1413, 384
        $region44: #{tpu_custom_call.1} parent=39 // pred_fallthru
          _
      $region40: #{tpu_custom_call.1} parent=5 // pred_fallthru
        _
    $region6: #{tpu_custom_call.1} parent=1 // loop_footer
      %s16 = sadd.s32 1, %s12
    $region7: #{tpu_custom_call.1} parent=1 // loop_footer_branch
      %11 = sbr.rel target = $region3
    $region8: #{tpu_custom_call.1} parent=1 // loop_exit
      _
    %1418 = vsyncpa [#allocation3], 1
    %s1419 = scalar_lea.sflag [#allocation3], 1
    %1420 = vsyncpa %s1419, 1

</llo_original>
